<compile_context>
chip_gen: v6e
topology: v6e:2x2x1
jax: 0.10.0
libtpu: 0.0.40
codegen_flags: <defaults>
</compile_context>

<pallas_src>
import functools

import numpy as np
import jax
import jax.numpy as jnp
from jax import lax
from jax.experimental import pallas as pl
from jax.experimental.pallas import tpu as pltpu


# ------------------------------ Pallas kernel -------------------------------

def _dense_layer_kernel(*refs, n_seg, B, H, W, mxu_dtype, im2col_dtype):
    # refs layout:
    #   x_0..x_{S-1}   : (B, C_i, HW)   input segments, channels on sublanes, HW on lanes
    #   s1_0..s1_{S-1} : (C_i, 1)       folded BN1 scale per segment
    #   b1_0..b1_{S-1} : (C_i, 1)       folded BN1 shift per segment
    #   w1_0..w1_{S-1} : (Cmid, C_i)    1x1 conv weights (BN2 scale folded), mxu_dtype
    #   b2             : (Cmid, 1)      BN2 shift (f32)
    #   w2             : (Cout, 9*Cmid) 3x3 conv weights, tap-major, mxu_dtype
    #   masks          : (9, HW)        0/1 edge masks per tap, im2col_dtype
    #   o              : (B, Cout, HW)  lane-dense output
    #   col            : (9*Cmid, HW)   im2col scratch (VMEM), im2col_dtype
    x_refs = refs[0:n_seg]
    s1_refs = refs[n_seg:2 * n_seg]
    b1_refs = refs[2 * n_seg:3 * n_seg]
    w1_refs = refs[3 * n_seg:4 * n_seg]
    b2_ref, w2_ref, mask_ref, o_ref, col_ref = refs[4 * n_seg:]

    HW = H * W
    Cmid = b2_ref.shape[0]
    f32 = jnp.float32

    # Loaded once per grid step, reused for all B images (no per-step weight casts).
    w2 = w2_ref[...]
    b2 = b2_ref[...]
    masks = mask_ref[...]

    for b in range(B):   # static unroll over the images of this grid step
        # ---- Stage 1: per-segment BN1 + ReLU + 1x1 conv (BN2 scale folded into w1) ----
        z = None
        for i in range(n_seg):
            y = jnp.maximum(x_refs[i][b] * s1_refs[i][...] + b1_refs[i][...], 0.0)
            if y.dtype != mxu_dtype:
                y = y.astype(mxu_dtype)          # cast only at the matmul boundary
            part = jnp.dot(w1_refs[i][...], y, preferred_element_type=f32)
            z = part if z is None else z + part
        mid = jnp.maximum(z + b2, 0.0)           # (Cmid, HW), BN2 shift + ReLU, f32
        if mid.dtype != im2col_dtype:
            mid = mid.astype(im2col_dtype)       # bf16 im2col on v6e/v7x

        # ---- Stage 2: 3x3 conv (padding=1) as one K = 9*Cmid matmul ----
        # Each tap is a circular lane rotation (XLU) of `mid`; positions that would read
        # outside the image (top/bottom rows, left/right cols — which also covers the
        # circular wrap) are zeroed by the hoisted 0/1 masks.  Taps are written directly
        # into the scratch im2col at 8-aligned sublane offsets (Cmid multiple of 8).
        for dy in range(3):
            for dx in range(3):
                tap = dy * 3 + dx
                off = (dy - 1) * W + (dx - 1)    # flattened read offset for this tap
                # pltpu.roll == jnp.roll: out[p] = in[(p - shift) % HW]; we want in[p + off].
                t = mid if off == 0 else pltpu.roll(mid, (-off) % HW, axis=1)
                if tap != 4:                     # center tap is always fully valid
                    t = t * masks[tap:tap + 1, :]
                col_ref[pl.ds(tap * Cmid, Cmid), :] = t

        col = col_ref[...]
        if col.dtype != mxu_dtype:
            col = col.astype(mxu_dtype)          # v5e path: f32 im2col, bf16 matmul
        out = jnp.dot(w2, col, preferred_element_type=f32)   # (Cout, HW)
        o_ref[b] = out.astype(o_ref.dtype)


# -------------------------------- Wrapper ------------------------------------

def dense_layer_forward(input_features, params, eps=1e-5,
                        mxu_dtype=jnp.float32, im2col_dtype=None):
    """Inference-only _DenseLayer forward.

    input_features: list of NCHW arrays (the DenseNet concat is fused into the kernel).
    mxu_dtype:    dtype fed to the MXU (f32 exact; bf16 faster on v5e/v6e/v7x).
    im2col_dtype: dtype of the in-kernel im2col buffer.  Defaults to mxu_dtype.
                  Recommended: bf16/bf16 on v6e/v7x, bf16/f32 on v5e (no bf16 VALU),
                  f32/f32 when comparing against an f32 reference at tight tolerance.
    """
    mxu_dtype = np.dtype(mxu_dtype)
    im2col_dtype = mxu_dtype if im2col_dtype is None else np.dtype(im2col_dtype)

    N, _, H, W = input_features[0].shape
    HW = H * W
    seg_C = [int(f.shape[1]) for f in input_features]
    Cin = sum(seg_C)
    Cmid = params["w1"].shape[0]                   # bn_size * growth_rate
    Cout = params["w2"].shape[0]                   # growth_rate

    # Fold eval-mode BatchNorm into per-channel scale/shift (tiny, parameter-only glue).
    s1 = params["gamma1"] / jnp.sqrt(params["var1"] + eps)
    b1 = params["beta1"] - params["mean1"] * s1
    s2 = params["gamma2"] / jnp.sqrt(params["var2"] + eps)
    b2 = params["beta2"] - params["mean2"] * s2

    # conv1 (Cmid,Cin,1,1) -> (Cmid,Cin) with BN2 scale folded into rows (ReLU sits
    # between BN1 and conv1 so s1 cannot be folded); conv2 (Cout,Cmid,3,3) -> tap-major
    # (Cout, 9*Cmid) matching the in-kernel im2col layout.  Pre-cast once to mxu_dtype.
    w1s = params["w1"].reshape(Cmid, Cin) * s2[:, None]
    w2mat = jnp.transpose(params["w2"], (0, 2, 3, 1)).reshape(Cout, 9 * Cmid)
    w2mat = w2mat.astype(mxu_dtype)

    # Per-segment parameter slices — the feature-map concat itself never happens; each
    # input_features[i] goes to the kernel as its own lane-dense (B, C_i, HW) block.
    offs = np.cumsum([0] + seg_C)
    x_segs = [f.reshape(N, c, HW) for f, c in zip(input_features, seg_C)]
    s1_segs = [s1[o:o + c].reshape(c, 1) for o, c in zip(offs[:-1], seg_C)]
    b1_segs = [b1[o:o + c].reshape(c, 1) for o, c in zip(offs[:-1], seg_C)]
    w1_segs = [w1s[:, o:o + c].astype(mxu_dtype) for o, c in zip(offs[:-1], seg_C)]

    # Hoisted 3x3 edge masks, tap-major (9, HW): 1.0 where tap (dy,dx) reads a valid pixel.
    rr = np.arange(HW) // W
    cc = np.arange(HW) % W
    row_ok = {-1: rr != 0, 0: np.ones(HW, bool), 1: rr != H - 1}
    col_ok = {-1: cc != 0, 0: np.ones(HW, bool), 1: cc != W - 1}
    masks_np = np.stack([(row_ok[dy] & col_ok[dx]).astype(np.float32)
                         for dy in (-1, 0, 1) for dx in (-1, 0, 1)])
    masks = jnp.asarray(masks_np).astype(im2col_dtype)

    # Batch several images per grid step: per-step overhead (~0.35 us) dominates the tiny
    # per-image compute at these channel counts.  B = largest divisor of N that is <= 8.
    B = 1
    for cand in range(min(N, 8), 0, -1):
        if N % cand == 0:
            B = cand
            break

    n_seg = len(input_features)
    kernel = functools.partial(_dense_layer_kernel, n_seg=n_seg, B=B, H=H, W=W,
                               mxu_dtype=mxu_dtype, im2col_dtype=im2col_dtype)

    in_specs = (
        [pl.BlockSpec((B, c, HW), lambda n: (n, 0, 0)) for c in seg_C]       # x segments
        + [pl.BlockSpec((c, 1), lambda n: (0, 0)) for c in seg_C]            # s1 segments
        + [pl.BlockSpec((c, 1), lambda n: (0, 0)) for c in seg_C]            # b1 segments
        + [pl.BlockSpec((Cmid, c), lambda n: (0, 0)) for c in seg_C]         # w1 segments
        + [pl.BlockSpec((Cmid, 1), lambda n: (0, 0)),                        # b2
           pl.BlockSpec((Cout, 9 * Cmid), lambda n: (0, 0)),                 # w2
           pl.BlockSpec((9, HW), lambda n: (0, 0))]                          # masks
    )

    out_cf = pl.pallas_call(
        kernel,
        out_shape=jax.ShapeDtypeStruct((N, Cout, HW), jnp.float32),
        grid=(N // B,),
        in_specs=in_specs,
        out_specs=pl.BlockSpec((B, Cout, HW), lambda n: (n, 0, 0)),
        scratch_shapes=[pltpu.VMEM((9 * Cmid, HW), im2col_dtype)],
        compiler_params=pltpu.CompilerParams(
            dimension_semantics=("parallel",),
        ),
    )(*x_segs, *s1_segs, *b1_segs, *w1_segs,
      b2.reshape(Cmid, 1), w2mat, masks)

    return out_cf.reshape(N, Cout, H, W)                                     # NCHW


# --------------------------- Pure-JAX reference ------------------------------

def dense_layer_reference(input_features, params, eps=1e-5):
    x = jnp.concatenate(input_features, axis=1)

    def bn(x, g, b, m, v):
        return (x - m[None, :, None, None]) / jnp.sqrt(v + eps)[None, :, None, None] \
               * g[None, :, None, None] + b[None, :, None, None]

    x = jnp.maximum(bn(x, params["gamma1"], params["beta1"],
                       params["mean1"], params["var1"]), 0.0)
    x = lax.conv_general_dilated(x, params["w1"], (1, 1), "VALID",
                                 dimension_numbers=("NCHW", "OIHW", "NCHW"))
    x = jnp.maximum(bn(x, params["gamma2"], params["beta2"],
                       params["mean2"], params["var2"]), 0.0)
    x = lax.conv_general_dilated(x, params["w2"], (1, 1), ((1, 1), (1, 1)),
                                 dimension_numbers=("NCHW", "OIHW", "NCHW"))
    return x


# ---------------------------------- Main -------------------------------------

if __name__ == "__main__":
    # Module config: num_input_features=8 (two 4-channel inputs), growth_rate=8, bn_size=4
    num_input_features = 8
    growth_rate = 8
    bn_size = 4
    Cmid = bn_size * growth_rate          # 32
    N, H, W = 2, 16, 16

    key = jax.random.PRNGKey(0)
    keys = jax.random.split(key, 12)

    params = {
        "gamma1": 1.0 + 0.1 * jax.random.normal(keys[0], (num_input_features,), jnp.float32),
        "beta1":  0.1 * jax.random.normal(keys[1], (num_input_features,), jnp.float32),
        "mean1":  0.1 * jax.random.normal(keys[2], (num_input_features,), jnp.float32),
        "var1":   0.5 + 0.1 * jnp.abs(jax.random.normal(keys[3], (num_input_features,), jnp.float32)),
        "w1":     0.1 * jax.random.normal(keys[4], (Cmid, num_input_features, 1, 1), jnp.float32),
        "gamma2": 1.0 + 0.1 * jax.random.normal(keys[5], (Cmid,), jnp.float32),
        "beta2":  0.1 * jax.random.normal(keys[6], (Cmid,), jnp.float32),
        "mean2":  0.1 * jax.random.normal(keys[7], (Cmid,), jnp.float32),
        "var2":   0.5 + 0.1 * jnp.abs(jax.random.normal(keys[8], (Cmid,), jnp.float32)),
        "w2":     0.1 * jax.random.normal(keys[9], (growth_rate, Cmid, 3, 3), jnp.float32),
    }

    # input_features: list of NCHW tensors (PyTorch concatenates them along dim=1;
    # here the concat is fused into the kernel instead).
    x_a = jax.random.normal(keys[10], (N, 4, H, W), jnp.float32)
    x_b = jax.random.normal(keys[11], (N, 4, H, W), jnp.float32)
    input_features = [x_a, x_b]

    out = dense_layer_forward(input_features, params)      # exact f32 path
    out = jax.block_until_ready(out)

    ref = jax.block_until_ready(dense_layer_reference(input_features, params))
    assert out.shape == (N, growth_rate, H, W), out.shape
    assert jnp.allclose(out, ref, atol=1e-4, rtol=1e-4), float(jnp.max(jnp.abs(out - ref)))

    print("KERNEL_OK")
</pallas_src>

<mosaic_0001>
module attributes {stable_mosaic.version = 11 : i64} {
  func.func @_dense_layer_kernel(%arg0: i32, %arg1: memref<2x4x256xf32, #tpu.memory_space<vmem>>, %arg2: memref<2x4x256xf32, #tpu.memory_space<vmem>>, %arg3: memref<4x1xf32, #tpu.memory_space<vmem>>, %arg4: memref<4x1xf32, #tpu.memory_space<vmem>>, %arg5: memref<4x1xf32, #tpu.memory_space<vmem>>, %arg6: memref<4x1xf32, #tpu.memory_space<vmem>>, %arg7: memref<32x4xf32, #tpu.memory_space<vmem>>, %arg8: memref<32x4xf32, #tpu.memory_space<vmem>>, %arg9: memref<32x1xf32, #tpu.memory_space<vmem>>, %arg10: memref<8x288xf32, #tpu.memory_space<vmem>>, %arg11: memref<9x256xf32, #tpu.memory_space<vmem>>, %arg12: memref<2x8x256xf32, #tpu.memory_space<vmem>>, %arg13: memref<288x256xf32, #tpu.memory_space<vmem>>) attributes {dimension_semantics = [#tpu.dimension_semantics<parallel>], iteration_bounds = array<i64: 1>, scalar_prefetch = 0 : i64, scratch_operands = 1 : i64, tpu.core_type = #tpu.core_type<tc>, window_params = [{transform_indices = @transform_0, window_bounds = array<i64: 2, 4, 256>}, {transform_indices = @transform_1, window_bounds = array<i64: 2, 4, 256>}, {pipeline_mode = #tpu.pipeline_mode<synchronous>, transform_indices = @transform_2, window_bounds = array<i64: 4, 1>}, {pipeline_mode = #tpu.pipeline_mode<synchronous>, transform_indices = @transform_3, window_bounds = array<i64: 4, 1>}, {pipeline_mode = #tpu.pipeline_mode<synchronous>, transform_indices = @transform_4, window_bounds = array<i64: 4, 1>}, {pipeline_mode = #tpu.pipeline_mode<synchronous>, transform_indices = @transform_5, window_bounds = array<i64: 4, 1>}, {pipeline_mode = #tpu.pipeline_mode<synchronous>, transform_indices = @transform_6, window_bounds = array<i64: 32, 4>}, {pipeline_mode = #tpu.pipeline_mode<synchronous>, transform_indices = @transform_7, window_bounds = array<i64: 32, 4>}, {pipeline_mode = #tpu.pipeline_mode<synchronous>, transform_indices = @transform_8, window_bounds = array<i64: 32, 1>}, {pipeline_mode = #tpu.pipeline_mode<synchronous>, transform_indices = @transform_9, window_bounds = array<i64: 8, 288>}, {pipeline_mode = #tpu.pipeline_mode<synchronous>, transform_indices = @transform_10, window_bounds = array<i64: 9, 256>}, {transform_indices = @transform_11, window_bounds = array<i64: 2, 8, 256>}]} {
    %c0 = arith.constant 0 : index
    %c0_0 = arith.constant 0 : index
    %0 = vector.load %arg10[%c0, %c0_0] : memref<8x288xf32, #tpu.memory_space<vmem>>, vector<8x288xf32>
    %c0_1 = arith.constant 0 : index
    %c0_2 = arith.constant 0 : index
    %1 = vector.load %arg9[%c0_1, %c0_2] : memref<32x1xf32, #tpu.memory_space<vmem>>, vector<32x1xf32>
    %c0_3 = arith.constant 0 : index
    %c0_4 = arith.constant 0 : index
    %2 = vector.load %arg11[%c0_3, %c0_4] : memref<9x256xf32, #tpu.memory_space<vmem>>, vector<9x256xf32>
    %c0_5 = arith.constant 0 : index
    %c0_6 = arith.constant 0 : index
    %c0_7 = arith.constant 0 : index
    %3 = vector.load %arg1[%c0_5, %c0_6, %c0_7] : memref<2x4x256xf32, #tpu.memory_space<vmem>>, vector<1x4x256xf32>
    %4 = vector.shape_cast %3 : vector<1x4x256xf32> to vector<4x256xf32>
    %c0_8 = arith.constant 0 : index
    %c0_9 = arith.constant 0 : index
    %5 = vector.load %arg3[%c0_8, %c0_9] : memref<4x1xf32, #tpu.memory_space<vmem>>, vector<4x1xf32>
    %6 = vector.broadcast %5 : vector<4x1xf32> to vector<4x256xf32>
    %7 = arith.mulf %4, %6 : vector<4x256xf32>
    %c0_10 = arith.constant 0 : index
    %c0_11 = arith.constant 0 : index
    %8 = vector.load %arg5[%c0_10, %c0_11] : memref<4x1xf32, #tpu.memory_space<vmem>>, vector<4x1xf32>
    %9 = vector.broadcast %8 : vector<4x1xf32> to vector<4x256xf32>
    %10 = arith.addf %7, %9 : vector<4x256xf32>
    %cst = arith.constant 0.000000e+00 : f32
    %11 = vector.broadcast %cst : f32 to vector<4x256xf32>
    %12 = arith.maximumf %10, %11 : vector<4x256xf32>
    %c0_12 = arith.constant 0 : index
    %c0_13 = arith.constant 0 : index
    %13 = vector.load %arg7[%c0_12, %c0_13] : memref<32x4xf32, #tpu.memory_space<vmem>>, vector<32x4xf32>
    %cst_14 = arith.constant dense<0.000000e+00> : vector<32x256xf32>
    %14 = tpu.matmul %13, %12, %cst_14 {dimension_numbers = #tpu.dot_dimension_numbers<[1], [0], [0], [1], [0, 0, 1, 1], [], []>} : vector<32x4xf32>, vector<4x256xf32>, vector<32x256xf32> -> vector<32x256xf32>
    %c0_15 = arith.constant 0 : index
    %c0_16 = arith.constant 0 : index
    %c0_17 = arith.constant 0 : index
    %15 = vector.load %arg2[%c0_15, %c0_16, %c0_17] : memref<2x4x256xf32, #tpu.memory_space<vmem>>, vector<1x4x256xf32>
    %16 = vector.shape_cast %15 : vector<1x4x256xf32> to vector<4x256xf32>
    %c0_18 = arith.constant 0 : index
    %c0_19 = arith.constant 0 : index
    %17 = vector.load %arg4[%c0_18, %c0_19] : memref<4x1xf32, #tpu.memory_space<vmem>>, vector<4x1xf32>
    %18 = vector.broadcast %17 : vector<4x1xf32> to vector<4x256xf32>
    %19 = arith.mulf %16, %18 : vector<4x256xf32>
    %c0_20 = arith.constant 0 : index
    %c0_21 = arith.constant 0 : index
    %20 = vector.load %arg6[%c0_20, %c0_21] : memref<4x1xf32, #tpu.memory_space<vmem>>, vector<4x1xf32>
    %21 = vector.broadcast %20 : vector<4x1xf32> to vector<4x256xf32>
    %22 = arith.addf %19, %21 : vector<4x256xf32>
    %cst_22 = arith.constant 0.000000e+00 : f32
    %23 = vector.broadcast %cst_22 : f32 to vector<4x256xf32>
    %24 = arith.maximumf %22, %23 : vector<4x256xf32>
    %c0_23 = arith.constant 0 : index
    %c0_24 = arith.constant 0 : index
    %25 = vector.load %arg8[%c0_23, %c0_24] : memref<32x4xf32, #tpu.memory_space<vmem>>, vector<32x4xf32>
    %cst_25 = arith.constant dense<0.000000e+00> : vector<32x256xf32>
    %26 = tpu.matmul %25, %24, %cst_25 {dimension_numbers = #tpu.dot_dimension_numbers<[1], [0], [0], [1], [0, 0, 1, 1], [], []>} : vector<32x4xf32>, vector<4x256xf32>, vector<32x256xf32> -> vector<32x256xf32>
    %27 = arith.addf %14, %26 : vector<32x256xf32>
    %28 = vector.broadcast %1 : vector<32x1xf32> to vector<32x256xf32>
    %29 = arith.addf %27, %28 : vector<32x256xf32>
    %cst_26 = arith.constant 0.000000e+00 : f32
    %30 = vector.broadcast %cst_26 : f32 to vector<32x256xf32>
    %31 = arith.maximumf %29, %30 : vector<32x256xf32>
    %c17_i32 = arith.constant 17 : i32
    %32 = tpu.dynamic_rotate %31 by %c17_i32 dim 1 : vector<32x256xf32>, i32 -> vector<32x256xf32>
    %33 = vector.extract_strided_slice %2 {offsets = [0, 0], sizes = [1, 256], strides = [1, 1]} : vector<9x256xf32> to vector<1x256xf32>
    %34 = vector.broadcast %33 : vector<1x256xf32> to vector<32x256xf32>
    %35 = arith.mulf %32, %34 : vector<32x256xf32>
    %c0_27 = arith.constant 0 : index
    %c0_28 = arith.constant 0 : index
    %36 = vector.load %arg13[%c0_27, %c0_28] : memref<288x256xf32, #tpu.memory_space<vmem>>, vector<32x256xf32>
    tpu.vector_store %arg13[%c0_27, %c0_28], %35 {strides = array<i32>} : memref<288x256xf32, #tpu.memory_space<vmem>>, vector<32x256xf32>,
    %c16_i32 = arith.constant 16 : i32
    %37 = tpu.dynamic_rotate %31 by %c16_i32 dim 1 : vector<32x256xf32>, i32 -> vector<32x256xf32>
    %38 = vector.extract_strided_slice %2 {offsets = [1, 0], sizes = [1, 256], strides = [1, 1]} : vector<9x256xf32> to vector<1x256xf32>
    %39 = vector.broadcast %38 : vector<1x256xf32> to vector<32x256xf32>
    %40 = arith.mulf %37, %39 : vector<32x256xf32>
    %c32 = arith.constant 32 : index
    %c0_29 = arith.constant 0 : index
    %41 = vector.load %arg13[%c32, %c0_29] : memref<288x256xf32, #tpu.memory_space<vmem>>, vector<32x256xf32>
    tpu.vector_store %arg13[%c32, %c0_29], %40 {strides = array<i32>} : memref<288x256xf32, #tpu.memory_space<vmem>>, vector<32x256xf32>,
    %c15_i32 = arith.constant 15 : i32
    %42 = tpu.dynamic_rotate %31 by %c15_i32 dim 1 : vector<32x256xf32>, i32 -> vector<32x256xf32>
    %43 = vector.extract_strided_slice %2 {offsets = [2, 0], sizes = [1, 256], strides = [1, 1]} : vector<9x256xf32> to vector<1x256xf32>
    %44 = vector.broadcast %43 : vector<1x256xf32> to vector<32x256xf32>
    %45 = arith.mulf %42, %44 : vector<32x256xf32>
    %c64 = arith.constant 64 : index
    %c0_30 = arith.constant 0 : index
    %46 = vector.load %arg13[%c64, %c0_30] : memref<288x256xf32, #tpu.memory_space<vmem>>, vector<32x256xf32>
    tpu.vector_store %arg13[%c64, %c0_30], %45 {strides = array<i32>} : memref<288x256xf32, #tpu.memory_space<vmem>>, vector<32x256xf32>,
    %c1_i32 = arith.constant 1 : i32
    %47 = tpu.dynamic_rotate %31 by %c1_i32 dim 1 : vector<32x256xf32>, i32 -> vector<32x256xf32>
    %48 = vector.extract_strided_slice %2 {offsets = [3, 0], sizes = [1, 256], strides = [1, 1]} : vector<9x256xf32> to vector<1x256xf32>
    %49 = vector.broadcast %48 : vector<1x256xf32> to vector<32x256xf32>
    %50 = arith.mulf %47, %49 : vector<32x256xf32>
    %c96 = arith.constant 96 : index
    %c0_31 = arith.constant 0 : index
    %51 = vector.load %arg13[%c96, %c0_31] : memref<288x256xf32, #tpu.memory_space<vmem>>, vector<32x256xf32>
    tpu.vector_store %arg13[%c96, %c0_31], %50 {strides = array<i32>} : memref<288x256xf32, #tpu.memory_space<vmem>>, vector<32x256xf32>,
    %c128 = arith.constant 128 : index
    %c0_32 = arith.constant 0 : index
    %52 = vector.load %arg13[%c128, %c0_32] : memref<288x256xf32, #tpu.memory_space<vmem>>, vector<32x256xf32>
    tpu.vector_store %arg13[%c128, %c0_32], %31 {strides = array<i32>} : memref<288x256xf32, #tpu.memory_space<vmem>>, vector<32x256xf32>,
    %c255_i32 = arith.constant 255 : i32
    %53 = tpu.dynamic_rotate %31 by %c255_i32 dim 1 : vector<32x256xf32>, i32 -> vector<32x256xf32>
    %54 = vector.extract_strided_slice %2 {offsets = [5, 0], sizes = [1, 256], strides = [1, 1]} : vector<9x256xf32> to vector<1x256xf32>
    %55 = vector.broadcast %54 : vector<1x256xf32> to vector<32x256xf32>
    %56 = arith.mulf %53, %55 : vector<32x256xf32>
    %c160 = arith.constant 160 : index
    %c0_33 = arith.constant 0 : index
    %57 = vector.load %arg13[%c160, %c0_33] : memref<288x256xf32, #tpu.memory_space<vmem>>, vector<32x256xf32>
    tpu.vector_store %arg13[%c160, %c0_33], %56 {strides = array<i32>} : memref<288x256xf32, #tpu.memory_space<vmem>>, vector<32x256xf32>,
    %c241_i32 = arith.constant 241 : i32
    %58 = tpu.dynamic_rotate %31 by %c241_i32 dim 1 : vector<32x256xf32>, i32 -> vector<32x256xf32>
    %59 = vector.extract_strided_slice %2 {offsets = [6, 0], sizes = [1, 256], strides = [1, 1]} : vector<9x256xf32> to vector<1x256xf32>
    %60 = vector.broadcast %59 : vector<1x256xf32> to vector<32x256xf32>
    %61 = arith.mulf %58, %60 : vector<32x256xf32>
    %c192 = arith.constant 192 : index
    %c0_34 = arith.constant 0 : index
    %62 = vector.load %arg13[%c192, %c0_34] : memref<288x256xf32, #tpu.memory_space<vmem>>, vector<32x256xf32>
    tpu.vector_store %arg13[%c192, %c0_34], %61 {strides = array<i32>} : memref<288x256xf32, #tpu.memory_space<vmem>>, vector<32x256xf32>,
    %c240_i32 = arith.constant 240 : i32
    %63 = tpu.dynamic_rotate %31 by %c240_i32 dim 1 : vector<32x256xf32>, i32 -> vector<32x256xf32>
    %64 = vector.extract_strided_slice %2 {offsets = [7, 0], sizes = [1, 256], strides = [1, 1]} : vector<9x256xf32> to vector<1x256xf32>
    %65 = vector.broadcast %64 : vector<1x256xf32> to vector<32x256xf32>
    %66 = arith.mulf %63, %65 : vector<32x256xf32>
    %c224 = arith.constant 224 : index
    %c0_35 = arith.constant 0 : index
    %67 = vector.load %arg13[%c224, %c0_35] : memref<288x256xf32, #tpu.memory_space<vmem>>, vector<32x256xf32>
    tpu.vector_store %arg13[%c224, %c0_35], %66 {strides = array<i32>} : memref<288x256xf32, #tpu.memory_space<vmem>>, vector<32x256xf32>,
    %c239_i32 = arith.constant 239 : i32
    %68 = tpu.dynamic_rotate %31 by %c239_i32 dim 1 : vector<32x256xf32>, i32 -> vector<32x256xf32>
    %69 = vector.extract_strided_slice %2 {offsets = [8, 0], sizes = [1, 256], strides = [1, 1]} : vector<9x256xf32> to vector<1x256xf32>
    %70 = vector.broadcast %69 : vector<1x256xf32> to vector<32x256xf32>
    %71 = arith.mulf %68, %70 : vector<32x256xf32>
    %c256 = arith.constant 256 : index
    %c0_36 = arith.constant 0 : index
    %72 = vector.load %arg13[%c256, %c0_36] : memref<288x256xf32, #tpu.memory_space<vmem>>, vector<32x256xf32>
    tpu.vector_store %arg13[%c256, %c0_36], %71 {strides = array<i32>} : memref<288x256xf32, #tpu.memory_space<vmem>>, vector<32x256xf32>,
    %c0_37 = arith.constant 0 : index
    %c0_38 = arith.constant 0 : index
    %73 = vector.load %arg13[%c0_37, %c0_38] : memref<288x256xf32, #tpu.memory_space<vmem>>, vector<288x256xf32>
    %cst_39 = arith.constant dense<0.000000e+00> : vector<8x256xf32>
    %74 = tpu.matmul %0, %73, %cst_39 {dimension_numbers = #tpu.dot_dimension_numbers<[1], [0], [0], [1], [0, 0, 1, 1], [], []>} : vector<8x288xf32>, vector<288x256xf32>, vector<8x256xf32> -> vector<8x256xf32>
    %c0_40 = arith.constant 0 : index
    %c0_41 = arith.constant 0 : index
    %c0_42 = arith.constant 0 : index
    %75 = vector.load %arg12[%c0_40, %c0_41, %c0_42] : memref<2x8x256xf32, #tpu.memory_space<vmem>>, vector<1x8x256xf32>
    %76 = vector.shape_cast %75 : vector<1x8x256xf32> to vector<8x256xf32>
    %77 = vector.shape_cast %74 : vector<8x256xf32> to vector<1x8x256xf32>
    tpu.vector_store %arg12[%c0_40, %c0_41, %c0_42], %77 {strides = array<i32>} : memref<2x8x256xf32, #tpu.memory_space<vmem>>, vector<1x8x256xf32>,
    %c1 = arith.constant 1 : index
    %c0_43 = arith.constant 0 : index
    %c0_44 = arith.constant 0 : index
    %78 = vector.load %arg1[%c1, %c0_43, %c0_44] : memref<2x4x256xf32, #tpu.memory_space<vmem>>, vector<1x4x256xf32>
    %79 = vector.shape_cast %78 : vector<1x4x256xf32> to vector<4x256xf32>
    %c0_45 = arith.constant 0 : index
    %c0_46 = arith.constant 0 : index
    %80 = vector.load %arg3[%c0_45, %c0_46] : memref<4x1xf32, #tpu.memory_space<vmem>>, vector<4x1xf32>
    %81 = vector.broadcast %80 : vector<4x1xf32> to vector<4x256xf32>
    %82 = arith.mulf %79, %81 : vector<4x256xf32>
    %c0_47 = arith.constant 0 : index
    %c0_48 = arith.constant 0 : index
    %83 = vector.load %arg5[%c0_47, %c0_48] : memref<4x1xf32, #tpu.memory_space<vmem>>, vector<4x1xf32>
    %84 = vector.broadcast %83 : vector<4x1xf32> to vector<4x256xf32>
    %85 = arith.addf %82, %84 : vector<4x256xf32>
    %cst_49 = arith.constant 0.000000e+00 : f32
    %86 = vector.broadcast %cst_49 : f32 to vector<4x256xf32>
    %87 = arith.maximumf %85, %86 : vector<4x256xf32>
    %c0_50 = arith.constant 0 : index
    %c0_51 = arith.constant 0 : index
    %88 = vector.load %arg7[%c0_50, %c0_51] : memref<32x4xf32, #tpu.memory_space<vmem>>, vector<32x4xf32>
    %cst_52 = arith.constant dense<0.000000e+00> : vector<32x256xf32>
    %89 = tpu.matmul %88, %87, %cst_52 {dimension_numbers = #tpu.dot_dimension_numbers<[1], [0], [0], [1], [0, 0, 1, 1], [], []>} : vector<32x4xf32>, vector<4x256xf32>, vector<32x256xf32> -> vector<32x256xf32>
    %c1_53 = arith.constant 1 : index
    %c0_54 = arith.constant 0 : index
    %c0_55 = arith.constant 0 : index
    %90 = vector.load %arg2[%c1_53, %c0_54, %c0_55] : memref<2x4x256xf32, #tpu.memory_space<vmem>>, vector<1x4x256xf32>
    %91 = vector.shape_cast %90 : vector<1x4x256xf32> to vector<4x256xf32>
    %c0_56 = arith.constant 0 : index
    %c0_57 = arith.constant 0 : index
    %92 = vector.load %arg4[%c0_56, %c0_57] : memref<4x1xf32, #tpu.memory_space<vmem>>, vector<4x1xf32>
    %93 = vector.broadcast %92 : vector<4x1xf32> to vector<4x256xf32>
    %94 = arith.mulf %91, %93 : vector<4x256xf32>
    %c0_58 = arith.constant 0 : index
    %c0_59 = arith.constant 0 : index
    %95 = vector.load %arg6[%c0_58, %c0_59] : memref<4x1xf32, #tpu.memory_space<vmem>>, vector<4x1xf32>
    %96 = vector.broadcast %95 : vector<4x1xf32> to vector<4x256xf32>
    %97 = arith.addf %94, %96 : vector<4x256xf32>
    %cst_60 = arith.constant 0.000000e+00 : f32
    %98 = vector.broadcast %cst_60 : f32 to vector<4x256xf32>
    %99 = arith.maximumf %97, %98 : vector<4x256xf32>
    %c0_61 = arith.constant 0 : index
    %c0_62 = arith.constant 0 : index
    %100 = vector.load %arg8[%c0_61, %c0_62] : memref<32x4xf32, #tpu.memory_space<vmem>>, vector<32x4xf32>
    %cst_63 = arith.constant dense<0.000000e+00> : vector<32x256xf32>
    %101 = tpu.matmul %100, %99, %cst_63 {dimension_numbers = #tpu.dot_dimension_numbers<[1], [0], [0], [1], [0, 0, 1, 1], [], []>} : vector<32x4xf32>, vector<4x256xf32>, vector<32x256xf32> -> vector<32x256xf32>
    %102 = arith.addf %89, %101 : vector<32x256xf32>
    %103 = vector.broadcast %1 : vector<32x1xf32> to vector<32x256xf32>
    %104 = arith.addf %102, %103 : vector<32x256xf32>
    %cst_64 = arith.constant 0.000000e+00 : f32
    %105 = vector.broadcast %cst_64 : f32 to vector<32x256xf32>
    %106 = arith.maximumf %104, %105 : vector<32x256xf32>
    %c17_i32_65 = arith.constant 17 : i32
    %107 = tpu.dynamic_rotate %106 by %c17_i32_65 dim 1 : vector<32x256xf32>, i32 -> vector<32x256xf32>
    %108 = vector.extract_strided_slice %2 {offsets = [0, 0], sizes = [1, 256], strides = [1, 1]} : vector<9x256xf32> to vector<1x256xf32>
    %109 = vector.broadcast %108 : vector<1x256xf32> to vector<32x256xf32>
    %110 = arith.mulf %107, %109 : vector<32x256xf32>
    %c0_66 = arith.constant 0 : index
    %c0_67 = arith.constant 0 : index
    %111 = vector.load %arg13[%c0_66, %c0_67] : memref<288x256xf32, #tpu.memory_space<vmem>>, vector<32x256xf32>
    tpu.vector_store %arg13[%c0_66, %c0_67], %110 {strides = array<i32>} : memref<288x256xf32, #tpu.memory_space<vmem>>, vector<32x256xf32>,
    %c16_i32_68 = arith.constant 16 : i32
    %112 = tpu.dynamic_rotate %106 by %c16_i32_68 dim 1 : vector<32x256xf32>, i32 -> vector<32x256xf32>
    %113 = vector.extract_strided_slice %2 {offsets = [1, 0], sizes = [1, 256], strides = [1, 1]} : vector<9x256xf32> to vector<1x256xf32>
    %114 = vector.broadcast %113 : vector<1x256xf32> to vector<32x256xf32>
    %115 = arith.mulf %112, %114 : vector<32x256xf32>
    %c32_69 = arith.constant 32 : index
    %c0_70 = arith.constant 0 : index
    %116 = vector.load %arg13[%c32_69, %c0_70] : memref<288x256xf32, #tpu.memory_space<vmem>>, vector<32x256xf32>
    tpu.vector_store %arg13[%c32_69, %c0_70], %115 {strides = array<i32>} : memref<288x256xf32, #tpu.memory_space<vmem>>, vector<32x256xf32>,
    %c15_i32_71 = arith.constant 15 : i32
    %117 = tpu.dynamic_rotate %106 by %c15_i32_71 dim 1 : vector<32x256xf32>, i32 -> vector<32x256xf32>
    %118 = vector.extract_strided_slice %2 {offsets = [2, 0], sizes = [1, 256], strides = [1, 1]} : vector<9x256xf32> to vector<1x256xf32>
    %119 = vector.broadcast %118 : vector<1x256xf32> to vector<32x256xf32>
    %120 = arith.mulf %117, %119 : vector<32x256xf32>
    %c64_72 = arith.constant 64 : index
    %c0_73 = arith.constant 0 : index
    %121 = vector.load %arg13[%c64_72, %c0_73] : memref<288x256xf32, #tpu.memory_space<vmem>>, vector<32x256xf32>
    tpu.vector_store %arg13[%c64_72, %c0_73], %120 {strides = array<i32>} : memref<288x256xf32, #tpu.memory_space<vmem>>, vector<32x256xf32>,
    %c1_i32_74 = arith.constant 1 : i32
    %122 = tpu.dynamic_rotate %106 by %c1_i32_74 dim 1 : vector<32x256xf32>, i32 -> vector<32x256xf32>
    %123 = vector.extract_strided_slice %2 {offsets = [3, 0], sizes = [1, 256], strides = [1, 1]} : vector<9x256xf32> to vector<1x256xf32>
    %124 = vector.broadcast %123 : vector<1x256xf32> to vector<32x256xf32>
    %125 = arith.mulf %122, %124 : vector<32x256xf32>
    %c96_75 = arith.constant 96 : index
    %c0_76 = arith.constant 0 : index
    %126 = vector.load %arg13[%c96_75, %c0_76] : memref<288x256xf32, #tpu.memory_space<vmem>>, vector<32x256xf32>
    tpu.vector_store %arg13[%c96_75, %c0_76], %125 {strides = array<i32>} : memref<288x256xf32, #tpu.memory_space<vmem>>, vector<32x256xf32>,
    %c128_77 = arith.constant 128 : index
    %c0_78 = arith.constant 0 : index
    %127 = vector.load %arg13[%c128_77, %c0_78] : memref<288x256xf32, #tpu.memory_space<vmem>>, vector<32x256xf32>
    tpu.vector_store %arg13[%c128_77, %c0_78], %106 {strides = array<i32>} : memref<288x256xf32, #tpu.memory_space<vmem>>, vector<32x256xf32>,
    %c255_i32_79 = arith.constant 255 : i32
    %128 = tpu.dynamic_rotate %106 by %c255_i32_79 dim 1 : vector<32x256xf32>, i32 -> vector<32x256xf32>
    %129 = vector.extract_strided_slice %2 {offsets = [5, 0], sizes = [1, 256], strides = [1, 1]} : vector<9x256xf32> to vector<1x256xf32>
    %130 = vector.broadcast %129 : vector<1x256xf32> to vector<32x256xf32>
    %131 = arith.mulf %128, %130 : vector<32x256xf32>
    %c160_80 = arith.constant 160 : index
    %c0_81 = arith.constant 0 : index
    %132 = vector.load %arg13[%c160_80, %c0_81] : memref<288x256xf32, #tpu.memory_space<vmem>>, vector<32x256xf32>
    tpu.vector_store %arg13[%c160_80, %c0_81], %131 {strides = array<i32>} : memref<288x256xf32, #tpu.memory_space<vmem>>, vector<32x256xf32>,
    %c241_i32_82 = arith.constant 241 : i32
    %133 = tpu.dynamic_rotate %106 by %c241_i32_82 dim 1 : vector<32x256xf32>, i32 -> vector<32x256xf32>
    %134 = vector.extract_strided_slice %2 {offsets = [6, 0], sizes = [1, 256], strides = [1, 1]} : vector<9x256xf32> to vector<1x256xf32>
    %135 = vector.broadcast %134 : vector<1x256xf32> to vector<32x256xf32>
    %136 = arith.mulf %133, %135 : vector<32x256xf32>
    %c192_83 = arith.constant 192 : index
    %c0_84 = arith.constant 0 : index
    %137 = vector.load %arg13[%c192_83, %c0_84] : memref<288x256xf32, #tpu.memory_space<vmem>>, vector<32x256xf32>
    tpu.vector_store %arg13[%c192_83, %c0_84], %136 {strides = array<i32>} : memref<288x256xf32, #tpu.memory_space<vmem>>, vector<32x256xf32>,
    %c240_i32_85 = arith.constant 240 : i32
    %138 = tpu.dynamic_rotate %106 by %c240_i32_85 dim 1 : vector<32x256xf32>, i32 -> vector<32x256xf32>
    %139 = vector.extract_strided_slice %2 {offsets = [7, 0], sizes = [1, 256], strides = [1, 1]} : vector<9x256xf32> to vector<1x256xf32>
    %140 = vector.broadcast %139 : vector<1x256xf32> to vector<32x256xf32>
    %141 = arith.mulf %138, %140 : vector<32x256xf32>
    %c224_86 = arith.constant 224 : index
    %c0_87 = arith.constant 0 : index
    %142 = vector.load %arg13[%c224_86, %c0_87] : memref<288x256xf32, #tpu.memory_space<vmem>>, vector<32x256xf32>
    tpu.vector_store %arg13[%c224_86, %c0_87], %141 {strides = array<i32>} : memref<288x256xf32, #tpu.memory_space<vmem>>, vector<32x256xf32>,
    %c239_i32_88 = arith.constant 239 : i32
    %143 = tpu.dynamic_rotate %106 by %c239_i32_88 dim 1 : vector<32x256xf32>, i32 -> vector<32x256xf32>
    %144 = vector.extract_strided_slice %2 {offsets = [8, 0], sizes = [1, 256], strides = [1, 1]} : vector<9x256xf32> to vector<1x256xf32>
    %145 = vector.broadcast %144 : vector<1x256xf32> to vector<32x256xf32>
    %146 = arith.mulf %143, %145 : vector<32x256xf32>
    %c256_89 = arith.constant 256 : index
    %c0_90 = arith.constant 0 : index
    %147 = vector.load %arg13[%c256_89, %c0_90] : memref<288x256xf32, #tpu.memory_space<vmem>>, vector<32x256xf32>
    tpu.vector_store %arg13[%c256_89, %c0_90], %146 {strides = array<i32>} : memref<288x256xf32, #tpu.memory_space<vmem>>, vector<32x256xf32>,
    %c0_91 = arith.constant 0 : index
    %c0_92 = arith.constant 0 : index
    %148 = vector.load %arg13[%c0_91, %c0_92] : memref<288x256xf32, #tpu.memory_space<vmem>>, vector<288x256xf32>
    %cst_93 = arith.constant dense<0.000000e+00> : vector<8x256xf32>
    %149 = tpu.matmul %0, %148, %cst_93 {dimension_numbers = #tpu.dot_dimension_numbers<[1], [0], [0], [1], [0, 0, 1, 1], [], []>} : vector<8x288xf32>, vector<288x256xf32>, vector<8x256xf32> -> vector<8x256xf32>
    %c1_94 = arith.constant 1 : index
    %c0_95 = arith.constant 0 : index
    %c0_96 = arith.constant 0 : index
    %150 = vector.load %arg12[%c1_94, %c0_95, %c0_96] : memref<2x8x256xf32, #tpu.memory_space<vmem>>, vector<1x8x256xf32>
    %151 = vector.shape_cast %150 : vector<1x8x256xf32> to vector<8x256xf32>
    %152 = vector.shape_cast %149 : vector<8x256xf32> to vector<1x8x256xf32>
    tpu.vector_store %arg12[%c1_94, %c0_95, %c0_96], %152 {strides = array<i32>} : memref<2x8x256xf32, #tpu.memory_space<vmem>>, vector<1x8x256xf32>,
    return
  }
  func.func @transform_0(%arg0: i32) -> (i32, i32, i32) {
    %c0_i32 = arith.constant 0 : i32
    %c0_i32_0 = arith.constant 0 : i32
    %c0_i32_1 = arith.constant 0 : i32
    return %arg0, %c0_i32, %c0_i32_0 : i32, i32, i32
  }
  func.func @transform_1(%arg0: i32) -> (i32, i32, i32) {
    %c0_i32 = arith.constant 0 : i32
    %c0_i32_0 = arith.constant 0 : i32
    %c0_i32_1 = arith.constant 0 : i32
    return %arg0, %c0_i32, %c0_i32_0 : i32, i32, i32
  }
  func.func @transform_2(%arg0: i32) -> (i32, i32) {
    %c0_i32 = arith.constant 0 : i32
    %c0_i32_0 = arith.constant 0 : i32
    %c0_i32_1 = arith.constant 0 : i32
    return %c0_i32, %c0_i32_0 : i32, i32
  }
  func.func @transform_3(%arg0: i32) -> (i32, i32) {
    %c0_i32 = arith.constant 0 : i32
    %c0_i32_0 = arith.constant 0 : i32
    %c0_i32_1 = arith.constant 0 : i32
    return %c0_i32, %c0_i32_0 : i32, i32
  }
  func.func @transform_4(%arg0: i32) -> (i32, i32) {
    %c0_i32 = arith.constant 0 : i32
    %c0_i32_0 = arith.constant 0 : i32
    %c0_i32_1 = arith.constant 0 : i32
    return %c0_i32, %c0_i32_0 : i32, i32
  }
  func.func @transform_5(%arg0: i32) -> (i32, i32) {
    %c0_i32 = arith.constant 0 : i32
    %c0_i32_0 = arith.constant 0 : i32
    %c0_i32_1 = arith.constant 0 : i32
    return %c0_i32, %c0_i32_0 : i32, i32
  }
  func.func @transform_6(%arg0: i32) -> (i32, i32) {
    %c0_i32 = arith.constant 0 : i32
    %c0_i32_0 = arith.constant 0 : i32
    %c0_i32_1 = arith.constant 0 : i32
    return %c0_i32, %c0_i32_0 : i32, i32
  }
  func.func @transform_7(%arg0: i32) -> (i32, i32) {
    %c0_i32 = arith.constant 0 : i32
    %c0_i32_0 = arith.constant 0 : i32
    %c0_i32_1 = arith.constant 0 : i32
    return %c0_i32, %c0_i32_0 : i32, i32
  }
  func.func @transform_8(%arg0: i32) -> (i32, i32) {
    %c0_i32 = arith.constant 0 : i32
    %c0_i32_0 = arith.constant 0 : i32
    %c0_i32_1 = arith.constant 0 : i32
    return %c0_i32, %c0_i32_0 : i32, i32
  }
  func.func @transform_9(%arg0: i32) -> (i32, i32) {
    %c0_i32 = arith.constant 0 : i32
    %c0_i32_0 = arith.constant 0 : i32
    %c0_i32_1 = arith.constant 0 : i32
    return %c0_i32, %c0_i32_0 : i32, i32
  }
  func.func @transform_10(%arg0: i32) -> (i32, i32) {
    %c0_i32 = arith.constant 0 : i32
    %c0_i32_0 = arith.constant 0 : i32
    %c0_i32_1 = arith.constant 0 : i32
    return %c0_i32, %c0_i32_0 : i32, i32
  }
  func.func @transform_11(%arg0: i32) -> (i32, i32, i32) {
    %c0_i32 = arith.constant 0 : i32
    %c0_i32_0 = arith.constant 0 : i32
    %c0_i32_1 = arith.constant 0 : i32
    return %arg0, %c0_i32, %c0_i32_0 : i32, i32, i32
  }
}

</mosaic_0001>

<llo_original>
// kernel: tpu_custom_call.1
$region0: #{tpu_custom_call.1}
  #allocation0 [shape = 'u32[]', space=smem, size = 0x4, offset = 0x4, fixed_abs, tag = 'smem constant byte address 0x4 - core index']
  #allocation1 [shape = 'u32[144,128]{1,0:T(1,128)}', space=vmem, size = 0x12000, scoped, tag = 'internal scratch']
  #allocation2 [shape = 'f32[288,256]{1,0:T(8,128)}', space=vmem, size = 0x48000, scoped, tag = 'scratch operand']
  %s0 = inlined_call_operand.vmem [shape: f32[2,4,256], index: 0, kind: input, shape index: {}]
  %s1 = inlined_call_operand.vmem [shape: f32[2,4,256], index: 1, kind: input, shape index: {}]
  %s2 = inlined_call_operand.vmem [shape: f32[4,1], index: 2, kind: input, shape index: {}]
  %s3 = inlined_call_operand.vmem [shape: f32[4,1], index: 3, kind: input, shape index: {}]
  %s4 = inlined_call_operand.vmem [shape: f32[4,1], index: 4, kind: input, shape index: {}]
  %s5 = inlined_call_operand.vmem [shape: f32[4,1], index: 5, kind: input, shape index: {}]
  %s6 = inlined_call_operand.vmem [shape: f32[32,4], index: 6, kind: input, shape index: {}]
  %s7 = inlined_call_operand.vmem [shape: f32[32,4], index: 7, kind: input, shape index: {}]
  %s8 = inlined_call_operand.vmem [shape: f32[32,1], index: 8, kind: input, shape index: {}]
  %s9 = inlined_call_operand.vmem [shape: f32[8,288], index: 9, kind: input, shape index: {}]
  %s10 = inlined_call_operand.vmem [shape: f32[9,256], index: 10, kind: input, shape index: {}]
  %s11 = inlined_call_operand.hbm [shape: f32[2,8,256], index: 11, kind: output, shape index: {}]
  %s12 = sld [smem:[#allocation0]]
  $region54: #{tpu_custom_call.1} parent=0
    _
  %s14 = ssub.s32 1, %s12
  %s15 = scalar_select 0, %s14, %s12
  $region1: #{tpu_custom_call.1} parent=0
    #allocation3 [shape = 'u8[16384]{0}', space=vmem, size = 0x4000, scoped, tag = 'output window, operand 0, single buffered']
    #allocation4 [shape = 's32[1]{0}', space=sflag, size = 0x4, scoped, tag = 'scoped memory for tpu_custom_call.1']
    %16 = vsyncpa [#allocation4], 0
    // Predicated region
    $region2: #{tpu_custom_call.1} parent=1 // pred_check
      _
    $region3: #{tpu_custom_call.1} parent=1 // pred_check_branch
      %18 = sbr.rel (0) target = $region5
    $region4: #{tpu_custom_call.1} parent=1 // pred_region
      _
    $region5: #{tpu_custom_call.1} parent=1 // pred_fallthru
      _
    // Predicated region
    $region6: #{tpu_custom_call.1} parent=1 // pred_check
      _
    $region7: #{tpu_custom_call.1} parent=1 // pred_check_branch
      %20 = sbr.rel (0) target = $region9
    $region8: #{tpu_custom_call.1} parent=1 // pred_region
      _
    $region9: #{tpu_custom_call.1} parent=1 // pred_fallthru
      _
    // Predicated region
    $region10: #{tpu_custom_call.1} parent=1 // pred_check
      _
    $region11: #{tpu_custom_call.1} parent=1 // pred_check_branch
      %22 = sbr.rel (0) target = $region13
    $region12: #{tpu_custom_call.1} parent=1 // pred_region
      _
    $region13: #{tpu_custom_call.1} parent=1 // pred_fallthru
      _
    // Predicated region
    $region14: #{tpu_custom_call.1} parent=1 // pred_check
      _
    $region15: #{tpu_custom_call.1} parent=1 // pred_check_branch
      %24 = sbr.rel (0) target = $region17
    $region16: #{tpu_custom_call.1} parent=1 // pred_region
      _
    $region17: #{tpu_custom_call.1} parent=1 // pred_fallthru
      _
    // Predicated region
    $region18: #{tpu_custom_call.1} parent=1 // pred_check
      _
    $region19: #{tpu_custom_call.1} parent=1 // pred_check_branch
      %26 = sbr.rel (0) target = $region21
    $region20: #{tpu_custom_call.1} parent=1 // pred_region
      _
    $region21: #{tpu_custom_call.1} parent=1 // pred_fallthru
      _
    // Predicated region
    $region22: #{tpu_custom_call.1} parent=1 // pred_check
      _
    $region23: #{tpu_custom_call.1} parent=1 // pred_check_branch
      %28 = sbr.rel (0) target = $region25
    $region24: #{tpu_custom_call.1} parent=1 // pred_region
      _
    $region25: #{tpu_custom_call.1} parent=1 // pred_fallthru
      _
    // Predicated region
    $region26: #{tpu_custom_call.1} parent=1 // pred_check
      _
    $region27: #{tpu_custom_call.1} parent=1 // pred_check_branch
      %30 = sbr.rel (0) target = $region29
    $region28: #{tpu_custom_call.1} parent=1 // pred_region
      _
    $region29: #{tpu_custom_call.1} parent=1 // pred_fallthru
      _
    // Predicated region
    $region30: #{tpu_custom_call.1} parent=1 // pred_check
      _
    $region31: #{tpu_custom_call.1} parent=1 // pred_check_branch
      %32 = sbr.rel (0) target = $region33
    $region32: #{tpu_custom_call.1} parent=1 // pred_region
      _
    $region33: #{tpu_custom_call.1} parent=1 // pred_fallthru
      _
    // Predicated region
    $region34: #{tpu_custom_call.1} parent=1 // pred_check
      _
    $region35: #{tpu_custom_call.1} parent=1 // pred_check_branch
      %34 = sbr.rel (0) target = $region37
    $region36: #{tpu_custom_call.1} parent=1 // pred_region
      _
    $region37: #{tpu_custom_call.1} parent=1 // pred_fallthru
      _
    // Predicated region
    $region38: #{tpu_custom_call.1} parent=1 // pred_check
      _
    $region39: #{tpu_custom_call.1} parent=1 // pred_check_branch
      %36 = sbr.rel (0) target = $region41
    $region40: #{tpu_custom_call.1} parent=1 // pred_region
      _
    $region41: #{tpu_custom_call.1} parent=1 // pred_fallthru
      _
    // Predicated region
    $region42: #{tpu_custom_call.1} parent=1 // pred_check
      _
    $region43: #{tpu_custom_call.1} parent=1 // pred_check_branch
      %38 = sbr.rel (0) target = $region45
    $region44: #{tpu_custom_call.1} parent=1 // pred_region
      _
    $region45: #{tpu_custom_call.1} parent=1 // pred_fallthru
      _
    %v39 = vld [vmem:[%s9] sm:$0xff]
    %v40 = vld [vmem:[%s9 + $0x8] sm:$0xff]
    %v41 = vld [vmem:[%s9 + $0x10] sm:$0xff]
    %v42 = vld [vmem:[%s8] sm:$0xff]
    %v43 = vld [vmem:[%s8 + $0x8] sm:$0xff]
    %v44 = vld [vmem:[%s8 + $0x10] sm:$0xff]
    %v45 = vld [vmem:[%s8 + $0x18] sm:$0xff]
    %v46 = vld [vmem:[%s10] sm:$0xff]
    %v47 = vld [vmem:[%s10 + $0x8] sm:$0xff]
    %v48 = vld [vmem:[%s10 + $0x10] sm:$0x1]
    %v49 = vld [vmem:[%s10 + $0x18] sm:$0x1]
    %v50 = vld [vmem:[%s0] sm:$0xff]
    %v51 = vld [vmem:[%s2] sm:$0xf]
    %53 = vset.pattern.permute.xlu0 0
    %54 = vperm.xlu0 %53, %v51
    %v55 = vpop.permute.xlu0 %54
    %v57 = vunpack.c.l.s4 839922192
    %v58 = vunpack.c.0.s8 %v57
    %v59 = vlaneseq
    %v60 = vshrl.u32 %v59, 7
    %v61 = vsub.s32 %v58, %v60
    %v62 = vrot.slane %v55, %v61
    %v64 = vmul.f32 %v50, %v62
    %v65 = vld [vmem:[%s4] sm:$0xf]
    %67 = vset.pattern.permute.xlu0 0
    %68 = vperm.xlu0 %67, %v65
    %v69 = vpop.permute.xlu0 %68
    %v71 = vunpack.c.l.s4 839922192
    %v72 = vunpack.c.0.s8 %v71
    %v73 = vlaneseq
    %v74 = vshrl.u32 %v73, 7
    %v75 = vsub.s32 %v72, %v74
    %v76 = vrot.slane %v69, %v75
    %v78 = vadd.f32 %v64, %v76
    %v79 = vmax.f32 %v78, 0.0
    %v80 = vld [vmem:[%s6] sm:$0xff]
    %v81 = vld [vmem:[%s6 + $0x8] sm:$0xff]
    %v82 = vld [vmem:[%s6 + $0x10] sm:$0xff]
    %v83 = vld [vmem:[%s6 + $0x18] sm:$0xff]
    %v84 = vld [vmem:[%s1] sm:$0xff]
    %v85 = vld [vmem:[%s3] sm:$0xf]
    %87 = vset.pattern.permute.xlu0 0
    %88 = vperm.xlu0 %87, %v85
    %v89 = vpop.permute.xlu0 %88
    %v91 = vunpack.c.l.s4 839922192
    %v92 = vunpack.c.0.s8 %v91
    %v93 = vlaneseq
    %v94 = vshrl.u32 %v93, 7
    %v95 = vsub.s32 %v92, %v94
    %v96 = vrot.slane %v89, %v95
    %v98 = vmul.f32 %v84, %v96
    %v99 = vld [vmem:[%s5] sm:$0xf]
    %101 = vset.pattern.permute.xlu0 0
    %102 = vperm.xlu0 %101, %v99
    %v103 = vpop.permute.xlu0 %102
    %v105 = vunpack.c.l.s4 839922192
    %v106 = vunpack.c.0.s8 %v105
    %v107 = vlaneseq
    %v108 = vshrl.u32 %v107, 7
    %v109 = vsub.s32 %v106, %v108
    %v110 = vrot.slane %v103, %v109
    %v112 = vadd.f32 %v98, %v110
    %v113 = vmax.f32 %v112, 0.0
    %v114 = vld [vmem:[%s7] sm:$0xff]
    %v115 = vld [vmem:[%s7 + $0x8] sm:$0xff]
    %v116 = vld [vmem:[%s7 + $0x10] sm:$0xff]
    %v117 = vld [vmem:[%s7 + $0x18] sm:$0xff]
    %v119 = vcombine.high %v113, %v113
    %vm120 = vcmask 31744
    %v122 = vsel %vm120, %v114, 0
    %v125 = vsel %vm120, %v115, 0
    %v128 = vsel %vm120, %v116, 0
    %v131 = vsel %vm120, %v117, 0
    %vm133 = vcmask 1043456
    %v134 = vsel %vm133, %v113, 0
    %v136 = vsel %vm133, %v119, 0
    %138 = vmatprep.subr.mxu0 0.0
    %139 = vmatpush1.msra.mxu0 0.0
    %140 = vmatprep.subr.mxu0 0.0
    %141 = vmatpush1.msra.mxu0 0.0
    %142 = vmatprep.subr.mxu0 0.0
    %143 = vmatpush1.msra.mxu0 0.0
    %144 = vmatprep.subr.mxu0 0.0
    %145 = vmatpush1.msra.mxu0 0.0
    %146 = vmatprep.subr.mxu0 0.0
    %147 = vmatpush1.msra.mxu0 0.0
    %148 = vmatprep.subr.mxu0 0.0
    %149 = vmatpush1.msra.mxu0 0.0
    %150 = vmatprep.subr.mxu0 0.0
    %151 = vmatpush1.msra.mxu0 0.0
    %152 = vmatprep.subr.mxu0 0.0
    %153 = vmatpush1.msra.mxu0 0.0
    %154 = vmatprep.subr.mxu0 0.0
    %155 = vmatpush1.msra.mxu0 0.0
    %156 = vmatprep.subr.mxu0 0.0
    %157 = vmatpush1.msra.mxu0 0.0
    %158 = vmatprep.subr.mxu0 0.0
    %159 = vmatpush1.msra.mxu0 0.0
    %160 = vmatprep.subr.mxu0 0.0
    %161 = vmatpush1.msra.mxu0 0.0
    %162 = vmatprep.subr.mxu0 0.0
    %163 = vmatpush1.msra.mxu0 0.0
    %164 = vmatprep.subr.mxu0 0.0
    %165 = vmatpush1.msra.mxu0 0.0
    %166 = vmatprep.subr.mxu0 0.0
    %167 = vmatpush1.msra.mxu0 0.0
    %168 = vmatprep.subr.mxu0 %v136
    %169 = vmatpush1.msra.mxu0 %v134
    %170 = vmatprep.subr.mxu0 0.0
    %171 = vmatpush2.msra.mxu0 0.0
    %172 = vmatprep.subr.mxu0 0.0
    %173 = vmatpush2.msra.mxu0 0.0
    %174 = vmatprep.subr.mxu0 0.0
    %175 = vmatpush2.msra.mxu0 0.0
    %176 = vmatprep.subr.mxu0 0.0
    %177 = vmatpush2.msra.mxu0 0.0
    %178 = vmatprep.subr.mxu0 0.0
    %179 = vmatpush2.msra.mxu0 0.0
    %180 = vmatprep.subr.mxu0 0.0
    %181 = vmatpush2.msra.mxu0 0.0
    %182 = vmatprep.subr.mxu0 0.0
    %183 = vmatpush2.msra.mxu0 0.0
    %184 = vmatprep.subr.mxu0 0.0
    %185 = vmatpush2.msra.mxu0 0.0
    %186 = vmatprep.subr.mxu0 0.0
    %187 = vmatpush2.msra.mxu0 0.0
    %188 = vmatprep.subr.mxu0 0.0
    %189 = vmatpush2.msra.mxu0 0.0
    %190 = vmatprep.subr.mxu0 0.0
    %191 = vmatpush2.msra.mxu0 0.0
    %192 = vmatprep.subr.mxu0 0.0
    %193 = vmatpush2.msra.mxu0 0.0
    %194 = vmatprep.subr.mxu0 0.0
    %195 = vmatpush2.msra.mxu0 0.0
    %196 = vmatprep.subr.mxu0 0.0
    %197 = vmatpush2.msra.mxu0 0.0
    %198 = vmatprep.subr.mxu0 0.0
    %199 = vmatpush2.msra.mxu0 0.0
    %200 = vmatprep.subr.mxu0 0.0
    %201 = vmatpush2.msra.mxu0 0.0
    %202 = vmatprep.mubr.f32.mxu0 0.0
    %203 = vmatmul.mubr.f32.gmra.mxu0 %v122
    %v204 = vpop.f32.mrf.mxu0
    %v205 = vadd.f32 0.0, %v204
    %v206 = vpop.f32.mrf.mxu0
    %v207 = vadd.f32 0.0, %v206
    %208 = vmatprep.mubr.f32.mxu0 0.0
    %209 = vmatmul.mubr.f32.gmra.mxu0 %v125
    %v210 = vpop.f32.mrf.mxu0
    %v211 = vadd.f32 0.0, %v210
    %v212 = vpop.f32.mrf.mxu0
    %v213 = vadd.f32 0.0, %v212
    %214 = vmatprep.mubr.f32.mxu0 0.0
    %215 = vmatmul.mubr.f32.gmra.mxu0 %v128
    %v216 = vpop.f32.mrf.mxu0
    %v217 = vadd.f32 0.0, %v216
    %v218 = vpop.f32.mrf.mxu0
    %v219 = vadd.f32 0.0, %v218
    %220 = vmatprep.mubr.f32.mxu0 0.0
    %221 = vmatmul.mubr.f32.gmra.mxu0 %v131
    %v222 = vpop.f32.mrf.mxu0
    %v223 = vadd.f32 0.0, %v222
    %v224 = vpop.f32.mrf.mxu0
    %v225 = vadd.f32 0.0, %v224
    %226 = vdwg.mxu0
    %v228 = vcombine.high %v79, %v79
    %v230 = vsel %vm120, %v80, 0
    %v233 = vsel %vm120, %v81, 0
    %v236 = vsel %vm120, %v82, 0
    %v239 = vsel %vm120, %v83, 0
    %v241 = vsel %vm133, %v79, 0
    %v243 = vsel %vm133, %v228, 0
    %245 = vmatprep.subr.mxu0 0.0
    %246 = vmatpush1.msra.mxu0 0.0
    %247 = vmatprep.subr.mxu0 0.0
    %248 = vmatpush1.msra.mxu0 0.0
    %249 = vmatprep.subr.mxu0 0.0
    %250 = vmatpush1.msra.mxu0 0.0
    %251 = vmatprep.subr.mxu0 0.0
    %252 = vmatpush1.msra.mxu0 0.0
    %253 = vmatprep.subr.mxu0 0.0
    %254 = vmatpush1.msra.mxu0 0.0
    %255 = vmatprep.subr.mxu0 0.0
    %256 = vmatpush1.msra.mxu0 0.0
    %257 = vmatprep.subr.mxu0 0.0
    %258 = vmatpush1.msra.mxu0 0.0
    %259 = vmatprep.subr.mxu0 0.0
    %260 = vmatpush1.msra.mxu0 0.0
    %261 = vmatprep.subr.mxu0 0.0
    %262 = vmatpush1.msra.mxu0 0.0
    %263 = vmatprep.subr.mxu0 0.0
    %264 = vmatpush1.msra.mxu0 0.0
    %265 = vmatprep.subr.mxu0 0.0
    %266 = vmatpush1.msra.mxu0 0.0
    %267 = vmatprep.subr.mxu0 0.0
    %268 = vmatpush1.msra.mxu0 0.0
    %269 = vmatprep.subr.mxu0 0.0
    %270 = vmatpush1.msra.mxu0 0.0
    %271 = vmatprep.subr.mxu0 0.0
    %272 = vmatpush1.msra.mxu0 0.0
    %273 = vmatprep.subr.mxu0 0.0
    %274 = vmatpush1.msra.mxu0 0.0
    %275 = vmatprep.subr.mxu0 %v243
    %276 = vmatpush1.msra.mxu0 %v241
    %277 = vmatprep.subr.mxu0 0.0
    %278 = vmatpush2.msra.mxu0 0.0
    %279 = vmatprep.subr.mxu0 0.0
    %280 = vmatpush2.msra.mxu0 0.0
    %281 = vmatprep.subr.mxu0 0.0
    %282 = vmatpush2.msra.mxu0 0.0
    %283 = vmatprep.subr.mxu0 0.0
    %284 = vmatpush2.msra.mxu0 0.0
    %285 = vmatprep.subr.mxu0 0.0
    %286 = vmatpush2.msra.mxu0 0.0
    %287 = vmatprep.subr.mxu0 0.0
    %288 = vmatpush2.msra.mxu0 0.0
    %289 = vmatprep.subr.mxu0 0.0
    %290 = vmatpush2.msra.mxu0 0.0
    %291 = vmatprep.subr.mxu0 0.0
    %292 = vmatpush2.msra.mxu0 0.0
    %293 = vmatprep.subr.mxu0 0.0
    %294 = vmatpush2.msra.mxu0 0.0
    %295 = vmatprep.subr.mxu0 0.0
    %296 = vmatpush2.msra.mxu0 0.0
    %297 = vmatprep.subr.mxu0 0.0
    %298 = vmatpush2.msra.mxu0 0.0
    %299 = vmatprep.subr.mxu0 0.0
    %300 = vmatpush2.msra.mxu0 0.0
    %301 = vmatprep.subr.mxu0 0.0
    %302 = vmatpush2.msra.mxu0 0.0
    %303 = vmatprep.subr.mxu0 0.0
    %304 = vmatpush2.msra.mxu0 0.0
    %305 = vmatprep.subr.mxu0 0.0
    %306 = vmatpush2.msra.mxu0 0.0
    %307 = vmatprep.subr.mxu0 0.0
    %308 = vmatpush2.msra.mxu0 0.0
    %309 = vmatprep.mubr.f32.mxu0 0.0
    %310 = vmatmul.mubr.f32.gmra.mxu0 %v230
    %v311 = vpop.f32.mrf.mxu0
    %v312 = vadd.f32 %v205, %v311
    %v313 = vpop.f32.mrf.mxu0
    %v314 = vadd.f32 %v207, %v313
    %315 = vmatprep.mubr.f32.mxu0 0.0
    %316 = vmatmul.mubr.f32.gmra.mxu0 %v233
    %v317 = vpop.f32.mrf.mxu0
    %v318 = vadd.f32 %v211, %v317
    %v319 = vpop.f32.mrf.mxu0
    %v320 = vadd.f32 %v213, %v319
    %321 = vmatprep.mubr.f32.mxu0 0.0
    %322 = vmatmul.mubr.f32.gmra.mxu0 %v236
    %v323 = vpop.f32.mrf.mxu0
    %v324 = vadd.f32 %v217, %v323
    %v325 = vpop.f32.mrf.mxu0
    %v326 = vadd.f32 %v219, %v325
    %327 = vmatprep.mubr.f32.mxu0 0.0
    %328 = vmatmul.mubr.f32.gmra.mxu0 %v239
    %v329 = vpop.f32.mrf.mxu0
    %v330 = vadd.f32 %v223, %v329
    %v331 = vpop.f32.mrf.mxu0
    %v332 = vadd.f32 %v225, %v331
    %333 = vdwg.mxu0
    %335 = vset.pattern.permute.xlu0 0
    %336 = vperm.xlu0 %335, %v42
    %v337 = vpop.permute.xlu0 %336
    %340 = vset.pattern.permute.xlu0 0
    %341 = vperm.xlu0 %340, %v43
    %v342 = vpop.permute.xlu0 %341
    %345 = vset.pattern.permute.xlu0 0
    %346 = vperm.xlu0 %345, %v44
    %v347 = vpop.permute.xlu0 %346
    %350 = vset.pattern.permute.xlu0 0
    %351 = vperm.xlu0 %350, %v45
    %v352 = vpop.permute.xlu0 %351
    %v354 = vadd.f32 %v312, %v337
    %v355 = vadd.f32 %v314, %v337
    %v356 = vadd.f32 %v318, %v342
    %v357 = vadd.f32 %v320, %v342
    %v358 = vadd.f32 %v324, %v347
    %v359 = vadd.f32 %v326, %v347
    %v360 = vadd.f32 %v330, %v352
    %v361 = vadd.f32 %v332, %v352
    %v362 = vmax.f32 %v354, 0.0
    %v363 = vmax.f32 %v355, 0.0
    %v364 = vmax.f32 %v356, 0.0
    %v365 = vmax.f32 %v357, 0.0
    %v366 = vmax.f32 %v358, 0.0
    %v367 = vmax.f32 %v359, 0.0
    %v368 = vmax.f32 %v360, 0.0
    %v369 = vmax.f32 %v361, 0.0
    %370 = vrot.lane.b32.xlu0 %v362, 17
    %v371 = vpop.permute.xlu0 %370
    %372 = vrot.lane.b32.xlu0 %v364, 17
    %v373 = vpop.permute.xlu0 %372
    %374 = vrot.lane.b32.xlu0 %v366, 17
    %v375 = vpop.permute.xlu0 %374
    %376 = vrot.lane.b32.xlu0 %v368, 17
    %v377 = vpop.permute.xlu0 %376
    %378 = vrot.lane.b32.xlu0 %v363, 17
    %v379 = vpop.permute.xlu0 %378
    %380 = vrot.lane.b32.xlu0 %v365, 17
    %v381 = vpop.permute.xlu0 %380
    %382 = vrot.lane.b32.xlu0 %v367, 17
    %v383 = vpop.permute.xlu0 %382
    %384 = vrot.lane.b32.xlu0 %v369, 17
    %v385 = vpop.permute.xlu0 %384
    %v386 = vlaneseq
    %v387 = vand.u32 %v386, 127
    %vm388 = vcmp.lt.s32.totalorder %v387, 17
    %v389 = vsel %vm388, %v371, %v379
    %v390 = vsel %vm388, %v373, %v381
    %v391 = vsel %vm388, %v375, %v383
    %v392 = vsel %vm388, %v377, %v385
    %v393 = vsel %vm388, %v379, %v371
    %v394 = vsel %vm388, %v381, %v373
    %v395 = vsel %vm388, %v383, %v375
    %v396 = vsel %vm388, %v385, %v377
    %v397 = vlaneseq
    %v398 = vshrl.u32 %v397, 7
    %v399 = vsub.s32 0, %v398
    %v400 = vrot.slane %v46, %v399
    %v401 = vlaneseq
    %v402 = vshrl.u32 %v401, 7
    %v403 = vsub.s32 0, %v402
    %v404 = vrot.slane %v47, %v403
    %v405 = vmul.f32 %v393, %v400
    %v406 = vmul.f32 %v389, %v404
    %v407 = vmul.f32 %v394, %v400
    %v408 = vmul.f32 %v390, %v404
    %v409 = vmul.f32 %v395, %v400
    %v410 = vmul.f32 %v391, %v404
    %v411 = vmul.f32 %v396, %v400
    %v412 = vmul.f32 %v392, %v404
    %413 = vst [vmem:[#allocation2] sm:$0xff] %v405
    %414 = vst [vmem:[#allocation2 + $0x8] sm:$0xff] %v406
    %415 = vst [vmem:[#allocation2 + $0x10] sm:$0xff] %v407
    %416 = vst [vmem:[#allocation2 + $0x18] sm:$0xff] %v408
    %417 = vst [vmem:[#allocation2 + $0x20] sm:$0xff] %v409
    %418 = vst [vmem:[#allocation2 + $0x28] sm:$0xff] %v410
    %419 = vst [vmem:[#allocation2 + $0x30] sm:$0xff] %v411
    %420 = vst [vmem:[#allocation2 + $0x38] sm:$0xff] %v412
    %421 = vrot.lane.b32.xlu0 %v362, 16
    %v422 = vpop.permute.xlu0 %421
    %423 = vrot.lane.b32.xlu0 %v364, 16
    %v424 = vpop.permute.xlu0 %423
    %425 = vrot.lane.b32.xlu0 %v366, 16
    %v426 = vpop.permute.xlu0 %425
    %427 = vrot.lane.b32.xlu0 %v368, 16
    %v428 = vpop.permute.xlu0 %427
    %429 = vrot.lane.b32.xlu0 %v363, 16
    %v430 = vpop.permute.xlu0 %429
    %431 = vrot.lane.b32.xlu0 %v365, 16
    %v432 = vpop.permute.xlu0 %431
    %433 = vrot.lane.b32.xlu0 %v367, 16
    %v434 = vpop.permute.xlu0 %433
    %435 = vrot.lane.b32.xlu0 %v369, 16
    %v436 = vpop.permute.xlu0 %435
    %vm437 = vcmp.lt.s32.totalorder %v387, 16
    %v438 = vsel %vm437, %v422, %v430
    %v439 = vsel %vm437, %v424, %v432
    %v440 = vsel %vm437, %v426, %v434
    %v441 = vsel %vm437, %v428, %v436
    %v442 = vsel %vm437, %v430, %v422
    %v443 = vsel %vm437, %v432, %v424
    %v444 = vsel %vm437, %v434, %v426
    %v445 = vsel %vm437, %v436, %v428
    %v446 = vlaneseq
    %v447 = vshrl.u32 %v446, 7
    %v448 = vsub.s32 1, %v447
    %v449 = vrot.slane %v46, %v448
    %v450 = vlaneseq
    %v451 = vshrl.u32 %v450, 7
    %v452 = vsub.s32 1, %v451
    %v453 = vrot.slane %v47, %v452
    %v454 = vmul.f32 %v442, %v449
    %v455 = vmul.f32 %v438, %v453
    %v456 = vmul.f32 %v443, %v449
    %v457 = vmul.f32 %v439, %v453
    %v458 = vmul.f32 %v444, %v449
    %v459 = vmul.f32 %v440, %v453
    %v460 = vmul.f32 %v445, %v449
    %v461 = vmul.f32 %v441, %v453
    %462 = vst [vmem:[#allocation2 + $0x40] sm:$0xff] %v454
    %463 = vst [vmem:[#allocation2 + $0x48] sm:$0xff] %v455
    %464 = vst [vmem:[#allocation2 + $0x50] sm:$0xff] %v456
    %465 = vst [vmem:[#allocation2 + $0x58] sm:$0xff] %v457
    %466 = vst [vmem:[#allocation2 + $0x60] sm:$0xff] %v458
    %467 = vst [vmem:[#allocation2 + $0x68] sm:$0xff] %v459
    %468 = vst [vmem:[#allocation2 + $0x70] sm:$0xff] %v460
    %469 = vst [vmem:[#allocation2 + $0x78] sm:$0xff] %v461
    %470 = vrot.lane.b32.xlu0 %v362, 15
    %v471 = vpop.permute.xlu0 %470
    %472 = vrot.lane.b32.xlu0 %v364, 15
    %v473 = vpop.permute.xlu0 %472
    %474 = vrot.lane.b32.xlu0 %v366, 15
    %v475 = vpop.permute.xlu0 %474
    %476 = vrot.lane.b32.xlu0 %v368, 15
    %v477 = vpop.permute.xlu0 %476
    %478 = vrot.lane.b32.xlu0 %v363, 15
    %v479 = vpop.permute.xlu0 %478
    %480 = vrot.lane.b32.xlu0 %v365, 15
    %v481 = vpop.permute.xlu0 %480
    %482 = vrot.lane.b32.xlu0 %v367, 15
    %v483 = vpop.permute.xlu0 %482
    %484 = vrot.lane.b32.xlu0 %v369, 15
    %v485 = vpop.permute.xlu0 %484
    %vm486 = vcmp.lt.s32.totalorder %v387, 15
    %v487 = vsel %vm486, %v471, %v479
    %v488 = vsel %vm486, %v473, %v481
    %v489 = vsel %vm486, %v475, %v483
    %v490 = vsel %vm486, %v477, %v485
    %v491 = vsel %vm486, %v479, %v471
    %v492 = vsel %vm486, %v481, %v473
    %v493 = vsel %vm486, %v483, %v475
    %v494 = vsel %vm486, %v485, %v477
    %v495 = vlaneseq
    %v496 = vshrl.u32 %v495, 7
    %v497 = vsub.s32 2, %v496
    %v498 = vrot.slane %v46, %v497
    %v499 = vlaneseq
    %v500 = vshrl.u32 %v499, 7
    %v501 = vsub.s32 2, %v500
    %v502 = vrot.slane %v47, %v501
    %v503 = vmul.f32 %v491, %v498
    %v504 = vmul.f32 %v487, %v502
    %v505 = vmul.f32 %v492, %v498
    %v506 = vmul.f32 %v488, %v502
    %v507 = vmul.f32 %v493, %v498
    %v508 = vmul.f32 %v489, %v502
    %v509 = vmul.f32 %v494, %v498
    %v510 = vmul.f32 %v490, %v502
    %511 = vst [vmem:[#allocation2 + $0x80] sm:$0xff] %v503
    %512 = vst [vmem:[#allocation2 + $0x88] sm:$0xff] %v504
    %513 = vst [vmem:[#allocation2 + $0x90] sm:$0xff] %v505
    %514 = vst [vmem:[#allocation2 + $0x98] sm:$0xff] %v506
    %515 = vst [vmem:[#allocation2 + $0xa0] sm:$0xff] %v507
    %516 = vst [vmem:[#allocation2 + $0xa8] sm:$0xff] %v508
    %517 = vst [vmem:[#allocation2 + $0xb0] sm:$0xff] %v509
    %518 = vst [vmem:[#allocation2 + $0xb8] sm:$0xff] %v510
    %519 = vrot.lane.b32.xlu0 %v362, 1
    %v520 = vpop.permute.xlu0 %519
    %521 = vrot.lane.b32.xlu0 %v364, 1
    %v522 = vpop.permute.xlu0 %521
    %523 = vrot.lane.b32.xlu0 %v366, 1
    %v524 = vpop.permute.xlu0 %523
    %525 = vrot.lane.b32.xlu0 %v368, 1
    %v526 = vpop.permute.xlu0 %525
    %527 = vrot.lane.b32.xlu0 %v363, 1
    %v528 = vpop.permute.xlu0 %527
    %529 = vrot.lane.b32.xlu0 %v365, 1
    %v530 = vpop.permute.xlu0 %529
    %531 = vrot.lane.b32.xlu0 %v367, 1
    %v532 = vpop.permute.xlu0 %531
    %533 = vrot.lane.b32.xlu0 %v369, 1
    %v534 = vpop.permute.xlu0 %533
    %vm535 = vcmp.lt.s32.totalorder %v387, 1
    %v536 = vsel %vm535, %v520, %v528
    %v537 = vsel %vm535, %v522, %v530
    %v538 = vsel %vm535, %v524, %v532
    %v539 = vsel %vm535, %v526, %v534
    %v540 = vsel %vm535, %v528, %v520
    %v541 = vsel %vm535, %v530, %v522
    %v542 = vsel %vm535, %v532, %v524
    %v543 = vsel %vm535, %v534, %v526
    %v544 = vlaneseq
    %v545 = vshrl.u32 %v544, 7
    %v546 = vsub.s32 3, %v545
    %v547 = vrot.slane %v46, %v546
    %v548 = vlaneseq
    %v549 = vshrl.u32 %v548, 7
    %v550 = vsub.s32 3, %v549
    %v551 = vrot.slane %v47, %v550
    %v552 = vmul.f32 %v540, %v547
    %v553 = vmul.f32 %v536, %v551
    %v554 = vmul.f32 %v541, %v547
    %v555 = vmul.f32 %v537, %v551
    %v556 = vmul.f32 %v542, %v547
    %v557 = vmul.f32 %v538, %v551
    %v558 = vmul.f32 %v543, %v547
    %v559 = vmul.f32 %v539, %v551
    %560 = vst [vmem:[#allocation2 + $0xc0] sm:$0xff] %v552
    %561 = vst [vmem:[#allocation2 + $0xc8] sm:$0xff] %v553
    %562 = vst [vmem:[#allocation2 + $0xd0] sm:$0xff] %v554
    %563 = vst [vmem:[#allocation2 + $0xd8] sm:$0xff] %v555
    %564 = vst [vmem:[#allocation2 + $0xe0] sm:$0xff] %v556
    %565 = vst [vmem:[#allocation2 + $0xe8] sm:$0xff] %v557
    %566 = vst [vmem:[#allocation2 + $0xf0] sm:$0xff] %v558
    %567 = vst [vmem:[#allocation2 + $0xf8] sm:$0xff] %v559
    %568 = vst [vmem:[#allocation2 + $0x100] sm:$0xff] %v362
    %569 = vst [vmem:[#allocation2 + $0x108] sm:$0xff] %v363
    %570 = vst [vmem:[#allocation2 + $0x110] sm:$0xff] %v364
    %571 = vst [vmem:[#allocation2 + $0x118] sm:$0xff] %v365
    %572 = vst [vmem:[#allocation2 + $0x120] sm:$0xff] %v366
    %573 = vst [vmem:[#allocation2 + $0x128] sm:$0xff] %v367
    %574 = vst [vmem:[#allocation2 + $0x130] sm:$0xff] %v368
    %575 = vst [vmem:[#allocation2 + $0x138] sm:$0xff] %v369
    %576 = vrot.lane.b32.xlu0 %v362, 127
    %v577 = vpop.permute.xlu0 %576
    %578 = vrot.lane.b32.xlu0 %v364, 127
    %v579 = vpop.permute.xlu0 %578
    %580 = vrot.lane.b32.xlu0 %v366, 127
    %v581 = vpop.permute.xlu0 %580
    %582 = vrot.lane.b32.xlu0 %v368, 127
    %v583 = vpop.permute.xlu0 %582
    %584 = vrot.lane.b32.xlu0 %v363, 127
    %v585 = vpop.permute.xlu0 %584
    %586 = vrot.lane.b32.xlu0 %v365, 127
    %v587 = vpop.permute.xlu0 %586
    %588 = vrot.lane.b32.xlu0 %v367, 127
    %v589 = vpop.permute.xlu0 %588
    %590 = vrot.lane.b32.xlu0 %v369, 127
    %v591 = vpop.permute.xlu0 %590
    %vm592 = vcmp.lt.s32.totalorder %v387, 127
    %v593 = vsel %vm592, %v577, %v585
    %v594 = vsel %vm592, %v579, %v587
    %v595 = vsel %vm592, %v581, %v589
    %v596 = vsel %vm592, %v583, %v591
    %v597 = vsel %vm592, %v585, %v577
    %v598 = vsel %vm592, %v587, %v579
    %v599 = vsel %vm592, %v589, %v581
    %v600 = vsel %vm592, %v591, %v583
    %v601 = vlaneseq
    %v602 = vshrl.u32 %v601, 7
    %v603 = vsub.s32 5, %v602
    %v604 = vrot.slane %v46, %v603
    %v605 = vlaneseq
    %v606 = vshrl.u32 %v605, 7
    %v607 = vsub.s32 5, %v606
    %v608 = vrot.slane %v47, %v607
    %v609 = vmul.f32 %v593, %v604
    %v610 = vmul.f32 %v597, %v608
    %v611 = vmul.f32 %v594, %v604
    %v612 = vmul.f32 %v598, %v608
    %v613 = vmul.f32 %v595, %v604
    %v614 = vmul.f32 %v599, %v608
    %v615 = vmul.f32 %v596, %v604
    %v616 = vmul.f32 %v600, %v608
    %617 = vst [vmem:[#allocation2 + $0x140] sm:$0xff] %v609
    %618 = vst [vmem:[#allocation2 + $0x148] sm:$0xff] %v610
    %619 = vst [vmem:[#allocation2 + $0x150] sm:$0xff] %v611
    %620 = vst [vmem:[#allocation2 + $0x158] sm:$0xff] %v612
    %621 = vst [vmem:[#allocation2 + $0x160] sm:$0xff] %v613
    %622 = vst [vmem:[#allocation2 + $0x168] sm:$0xff] %v614
    %623 = vst [vmem:[#allocation2 + $0x170] sm:$0xff] %v615
    %624 = vst [vmem:[#allocation2 + $0x178] sm:$0xff] %v616
    %625 = vrot.lane.b32.xlu0 %v362, 113
    %v626 = vpop.permute.xlu0 %625
    %627 = vrot.lane.b32.xlu0 %v364, 113
    %v628 = vpop.permute.xlu0 %627
    %629 = vrot.lane.b32.xlu0 %v366, 113
    %v630 = vpop.permute.xlu0 %629
    %631 = vrot.lane.b32.xlu0 %v368, 113
    %v632 = vpop.permute.xlu0 %631
    %633 = vrot.lane.b32.xlu0 %v363, 113
    %v634 = vpop.permute.xlu0 %633
    %635 = vrot.lane.b32.xlu0 %v365, 113
    %v636 = vpop.permute.xlu0 %635
    %637 = vrot.lane.b32.xlu0 %v367, 113
    %v638 = vpop.permute.xlu0 %637
    %639 = vrot.lane.b32.xlu0 %v369, 113
    %v640 = vpop.permute.xlu0 %639
    %vm641 = vcmp.lt.s32.totalorder %v387, 113
    %v642 = vsel %vm641, %v626, %v634
    %v643 = vsel %vm641, %v628, %v636
    %v644 = vsel %vm641, %v630, %v638
    %v645 = vsel %vm641, %v632, %v640
    %v646 = vsel %vm641, %v634, %v626
    %v647 = vsel %vm641, %v636, %v628
    %v648 = vsel %vm641, %v638, %v630
    %v649 = vsel %vm641, %v640, %v632
    %v650 = vlaneseq
    %v651 = vshrl.u32 %v650, 7
    %v652 = vsub.s32 6, %v651
    %v653 = vrot.slane %v46, %v652
    %v654 = vlaneseq
    %v655 = vshrl.u32 %v654, 7
    %v656 = vsub.s32 6, %v655
    %v657 = vrot.slane %v47, %v656
    %v658 = vmul.f32 %v642, %v653
    %v659 = vmul.f32 %v646, %v657
    %v660 = vmul.f32 %v643, %v653
    %v661 = vmul.f32 %v647, %v657
    %v662 = vmul.f32 %v644, %v653
    %v663 = vmul.f32 %v648, %v657
    %v664 = vmul.f32 %v645, %v653
    %v665 = vmul.f32 %v649, %v657
    %666 = vst [vmem:[#allocation2 + $0x180] sm:$0xff] %v658
    %667 = vst [vmem:[#allocation2 + $0x188] sm:$0xff] %v659
    %668 = vst [vmem:[#allocation2 + $0x190] sm:$0xff] %v660
    %669 = vst [vmem:[#allocation2 + $0x198] sm:$0xff] %v661
    %670 = vst [vmem:[#allocation2 + $0x1a0] sm:$0xff] %v662
    %671 = vst [vmem:[#allocation2 + $0x1a8] sm:$0xff] %v663
    %672 = vst [vmem:[#allocation2 + $0x1b0] sm:$0xff] %v664
    %673 = vst [vmem:[#allocation2 + $0x1b8] sm:$0xff] %v665
    %674 = vrot.lane.b32.xlu0 %v362, 112
    %v675 = vpop.permute.xlu0 %674
    %676 = vrot.lane.b32.xlu0 %v364, 112
    %v677 = vpop.permute.xlu0 %676
    %678 = vrot.lane.b32.xlu0 %v366, 112
    %v679 = vpop.permute.xlu0 %678
    %680 = vrot.lane.b32.xlu0 %v368, 112
    %v681 = vpop.permute.xlu0 %680
    %682 = vrot.lane.b32.xlu0 %v363, 112
    %v683 = vpop.permute.xlu0 %682
    %684 = vrot.lane.b32.xlu0 %v365, 112
    %v685 = vpop.permute.xlu0 %684
    %686 = vrot.lane.b32.xlu0 %v367, 112
    %v687 = vpop.permute.xlu0 %686
    %688 = vrot.lane.b32.xlu0 %v369, 112
    %v689 = vpop.permute.xlu0 %688
    %vm690 = vcmp.lt.s32.totalorder %v387, 112
    %v691 = vsel %vm690, %v675, %v683
    %v692 = vsel %vm690, %v677, %v685
    %v693 = vsel %vm690, %v679, %v687
    %v694 = vsel %vm690, %v681, %v689
    %v695 = vsel %vm690, %v683, %v675
    %v696 = vsel %vm690, %v685, %v677
    %v697 = vsel %vm690, %v687, %v679
    %v698 = vsel %vm690, %v689, %v681
    %v699 = vlaneseq
    %v700 = vshrl.u32 %v699, 7
    %v701 = vsub.s32 7, %v700
    %v702 = vrot.slane %v46, %v701
    %v703 = vlaneseq
    %v704 = vshrl.u32 %v703, 7
    %v705 = vsub.s32 7, %v704
    %v706 = vrot.slane %v47, %v705
    %v707 = vmul.f32 %v691, %v702
    %v708 = vmul.f32 %v695, %v706
    %v709 = vmul.f32 %v692, %v702
    %v710 = vmul.f32 %v696, %v706
    %v711 = vmul.f32 %v693, %v702
    %v712 = vmul.f32 %v697, %v706
    %v713 = vmul.f32 %v694, %v702
    %v714 = vmul.f32 %v698, %v706
    %715 = vst [vmem:[#allocation2 + $0x1c0] sm:$0xff] %v707
    %716 = vst [vmem:[#allocation2 + $0x1c8] sm:$0xff] %v708
    %717 = vst [vmem:[#allocation2 + $0x1d0] sm:$0xff] %v709
    %718 = vst [vmem:[#allocation2 + $0x1d8] sm:$0xff] %v710
    %719 = vst [vmem:[#allocation2 + $0x1e0] sm:$0xff] %v711
    %720 = vst [vmem:[#allocation2 + $0x1e8] sm:$0xff] %v712
    %721 = vst [vmem:[#allocation2 + $0x1f0] sm:$0xff] %v713
    %722 = vst [vmem:[#allocation2 + $0x1f8] sm:$0xff] %v714
    %723 = vrot.lane.b32.xlu0 %v362, 111
    %v724 = vpop.permute.xlu0 %723
    %725 = vrot.lane.b32.xlu0 %v364, 111
    %v726 = vpop.permute.xlu0 %725
    %727 = vrot.lane.b32.xlu0 %v366, 111
    %v728 = vpop.permute.xlu0 %727
    %729 = vrot.lane.b32.xlu0 %v368, 111
    %v730 = vpop.permute.xlu0 %729
    %731 = vrot.lane.b32.xlu0 %v363, 111
    %v732 = vpop.permute.xlu0 %731
    %733 = vrot.lane.b32.xlu0 %v365, 111
    %v734 = vpop.permute.xlu0 %733
    %735 = vrot.lane.b32.xlu0 %v367, 111
    %v736 = vpop.permute.xlu0 %735
    %737 = vrot.lane.b32.xlu0 %v369, 111
    %v738 = vpop.permute.xlu0 %737
    %vm739 = vcmp.lt.s32.totalorder %v387, 111
    %v740 = vsel %vm739, %v724, %v732
    %v741 = vsel %vm739, %v726, %v734
    %v742 = vsel %vm739, %v728, %v736
    %v743 = vsel %vm739, %v730, %v738
    %v744 = vsel %vm739, %v732, %v724
    %v745 = vsel %vm739, %v734, %v726
    %v746 = vsel %vm739, %v736, %v728
    %v747 = vsel %vm739, %v738, %v730
    %v748 = vlaneseq
    %v749 = vshrl.u32 %v748, 7
    %v750 = vsub.s32 0, %v749
    %v751 = vrot.slane %v48, %v750
    %v752 = vlaneseq
    %v753 = vshrl.u32 %v752, 7
    %v754 = vsub.s32 0, %v753
    %v755 = vrot.slane %v49, %v754
    %v756 = vmul.f32 %v740, %v751
    %v757 = vmul.f32 %v744, %v755
    %v758 = vmul.f32 %v741, %v751
    %v759 = vmul.f32 %v745, %v755
    %v760 = vmul.f32 %v742, %v751
    %v761 = vmul.f32 %v746, %v755
    %v762 = vmul.f32 %v743, %v751
    %v763 = vmul.f32 %v747, %v755
    %764 = vst [vmem:[#allocation2 + $0x200] sm:$0xff] %v756
    %765 = vst [vmem:[#allocation2 + $0x208] sm:$0xff] %v757
    %766 = vst [vmem:[#allocation2 + $0x210] sm:$0xff] %v758
    %767 = vst [vmem:[#allocation2 + $0x218] sm:$0xff] %v759
    %768 = vst [vmem:[#allocation2 + $0x220] sm:$0xff] %v760
    %769 = vst [vmem:[#allocation2 + $0x228] sm:$0xff] %v761
    %770 = vst [vmem:[#allocation2 + $0x230] sm:$0xff] %v762
    %771 = vst [vmem:[#allocation2 + $0x238] sm:$0xff] %v763
    %v772 = vld [vmem:[#allocation2] sm:$0xff]
    %v773 = vld [vmem:[#allocation2 + $0x8] sm:$0xff]
    %v774 = vld [vmem:[#allocation2 + $0x10] sm:$0xff]
    %v775 = vld [vmem:[#allocation2 + $0x18] sm:$0xff]
    %v776 = vld [vmem:[#allocation2 + $0x20] sm:$0xff]
    %v777 = vld [vmem:[#allocation2 + $0x28] sm:$0xff]
    %v778 = vld [vmem:[#allocation2 + $0x30] sm:$0xff]
    %v779 = vld [vmem:[#allocation2 + $0x38] sm:$0xff]
    %v780 = vld [vmem:[#allocation2 + $0x40] sm:$0xff]
    %v781 = vld [vmem:[#allocation2 + $0x48] sm:$0xff]
    %v782 = vld [vmem:[#allocation2 + $0x50] sm:$0xff]
    %v783 = vld [vmem:[#allocation2 + $0x58] sm:$0xff]
    %v784 = vld [vmem:[#allocation2 + $0x60] sm:$0xff]
    %v785 = vld [vmem:[#allocation2 + $0x68] sm:$0xff]
    %v786 = vld [vmem:[#allocation2 + $0x70] sm:$0xff]
    %v787 = vld [vmem:[#allocation2 + $0x78] sm:$0xff]
    %v788 = vld [vmem:[#allocation2 + $0x80] sm:$0xff]
    %v789 = vld [vmem:[#allocation2 + $0x88] sm:$0xff]
    %v790 = vld [vmem:[#allocation2 + $0x90] sm:$0xff]
    %v791 = vld [vmem:[#allocation2 + $0x98] sm:$0xff]
    %v792 = vld [vmem:[#allocation2 + $0xa0] sm:$0xff]
    %v793 = vld [vmem:[#allocation2 + $0xa8] sm:$0xff]
    %v794 = vld [vmem:[#allocation2 + $0xb0] sm:$0xff]
    %v795 = vld [vmem:[#allocation2 + $0xb8] sm:$0xff]
    %v796 = vld [vmem:[#allocation2 + $0xc0] sm:$0xff]
    %v797 = vld [vmem:[#allocation2 + $0xc8] sm:$0xff]
    %v798 = vld [vmem:[#allocation2 + $0xd0] sm:$0xff]
    %v799 = vld [vmem:[#allocation2 + $0xd8] sm:$0xff]
    %v800 = vld [vmem:[#allocation2 + $0xe0] sm:$0xff]
    %v801 = vld [vmem:[#allocation2 + $0xe8] sm:$0xff]
    %v802 = vld [vmem:[#allocation2 + $0xf0] sm:$0xff]
    %v803 = vld [vmem:[#allocation2 + $0xf8] sm:$0xff]
    %v804 = vld [vmem:[#allocation2 + $0x100] sm:$0xff]
    %v805 = vld [vmem:[#allocation2 + $0x108] sm:$0xff]
    %v806 = vld [vmem:[#allocation2 + $0x110] sm:$0xff]
    %v807 = vld [vmem:[#allocation2 + $0x118] sm:$0xff]
    %v808 = vld [vmem:[#allocation2 + $0x120] sm:$0xff]
    %v809 = vld [vmem:[#allocation2 + $0x128] sm:$0xff]
    %v810 = vld [vmem:[#allocation2 + $0x130] sm:$0xff]
    %v811 = vld [vmem:[#allocation2 + $0x138] sm:$0xff]
    %v812 = vld [vmem:[#allocation2 + $0x140] sm:$0xff]
    %v813 = vld [vmem:[#allocation2 + $0x148] sm:$0xff]
    %v814 = vld [vmem:[#allocation2 + $0x150] sm:$0xff]
    %v815 = vld [vmem:[#allocation2 + $0x158] sm:$0xff]
    %v816 = vld [vmem:[#allocation2 + $0x160] sm:$0xff]
    %v817 = vld [vmem:[#allocation2 + $0x168] sm:$0xff]
    %v818 = vld [vmem:[#allocation2 + $0x170] sm:$0xff]
    %v819 = vld [vmem:[#allocation2 + $0x178] sm:$0xff]
    %v820 = vld [vmem:[#allocation2 + $0x180] sm:$0xff]
    %v821 = vld [vmem:[#allocation2 + $0x188] sm:$0xff]
    %v822 = vld [vmem:[#allocation2 + $0x190] sm:$0xff]
    %v823 = vld [vmem:[#allocation2 + $0x198] sm:$0xff]
    %v824 = vld [vmem:[#allocation2 + $0x1a0] sm:$0xff]
    %v825 = vld [vmem:[#allocation2 + $0x1a8] sm:$0xff]
    %v826 = vld [vmem:[#allocation2 + $0x1b0] sm:$0xff]
    %v827 = vld [vmem:[#allocation2 + $0x1b8] sm:$0xff]
    %v828 = vld [vmem:[#allocation2 + $0x1c0] sm:$0xff]
    %v829 = vld [vmem:[#allocation2 + $0x1c8] sm:$0xff]
    %v830 = vld [vmem:[#allocation2 + $0x1d0] sm:$0xff]
    %v831 = vld [vmem:[#allocation2 + $0x1d8] sm:$0xff]
    %v832 = vld [vmem:[#allocation2 + $0x1e0] sm:$0xff]
    %v833 = vld [vmem:[#allocation2 + $0x1e8] sm:$0xff]
    %v834 = vld [vmem:[#allocation2 + $0x1f0] sm:$0xff]
    %v835 = vld [vmem:[#allocation2 + $0x1f8] sm:$0xff]
    %v836 = vld [vmem:[#allocation2 + $0x200] sm:$0xff]
    %v837 = vld [vmem:[#allocation2 + $0x208] sm:$0xff]
    %v838 = vld [vmem:[#allocation2 + $0x210] sm:$0xff]
    %v839 = vld [vmem:[#allocation2 + $0x218] sm:$0xff]
    %v840 = vld [vmem:[#allocation2 + $0x220] sm:$0xff]
    %v841 = vld [vmem:[#allocation2 + $0x228] sm:$0xff]
    %v842 = vld [vmem:[#allocation2 + $0x230] sm:$0xff]
    %v843 = vld [vmem:[#allocation2 + $0x238] sm:$0xff]
    %vm844 = vcmask 261120
    %v846 = vsel %vm844, %v41, 0
    %848 = vmatprep.subr.mxu0 %v803
    %849 = vmatpush1.msra.mxu0 %v802
    %850 = vmatprep.subr.mxu0 %v801
    %851 = vmatpush1.msra.mxu0 %v800
    %852 = vmatprep.subr.mxu0 %v799
    %853 = vmatpush1.msra.mxu0 %v798
    %854 = vmatprep.subr.mxu0 %v797
    %855 = vmatpush1.msra.mxu0 %v796
    %856 = vmatprep.subr.mxu0 %v795
    %857 = vmatpush1.msra.mxu0 %v794
    %858 = vmatprep.subr.mxu0 %v793
    %859 = vmatpush1.msra.mxu0 %v792
    %860 = vmatprep.subr.mxu0 %v791
    %861 = vmatpush1.msra.mxu0 %v790
    %862 = vmatprep.subr.mxu0 %v789
    %863 = vmatpush1.msra.mxu0 %v788
    %864 = vmatprep.subr.mxu0 %v787
    %865 = vmatpush1.msra.mxu0 %v786
    %866 = vmatprep.subr.mxu0 %v785
    %867 = vmatpush1.msra.mxu0 %v784
    %868 = vmatprep.subr.mxu0 %v783
    %869 = vmatpush1.msra.mxu0 %v782
    %870 = vmatprep.subr.mxu0 %v781
    %871 = vmatpush1.msra.mxu0 %v780
    %872 = vmatprep.subr.mxu0 %v779
    %873 = vmatpush1.msra.mxu0 %v778
    %874 = vmatprep.subr.mxu0 %v777
    %875 = vmatpush1.msra.mxu0 %v776
    %876 = vmatprep.subr.mxu0 %v775
    %877 = vmatpush1.msra.mxu0 %v774
    %878 = vmatprep.subr.mxu0 %v773
    %879 = vmatpush1.msra.mxu0 %v772
    %880 = vmatprep.subr.mxu0 %v835
    %881 = vmatpush2.msra.mxu0 %v834
    %882 = vmatprep.subr.mxu0 %v833
    %883 = vmatpush2.msra.mxu0 %v832
    %884 = vmatprep.subr.mxu0 %v831
    %885 = vmatpush2.msra.mxu0 %v830
    %886 = vmatprep.subr.mxu0 %v829
    %887 = vmatpush2.msra.mxu0 %v828
    %888 = vmatprep.subr.mxu0 %v827
    %889 = vmatpush2.msra.mxu0 %v826
    %890 = vmatprep.subr.mxu0 %v825
    %891 = vmatpush2.msra.mxu0 %v824
    %892 = vmatprep.subr.mxu0 %v823
    %893 = vmatpush2.msra.mxu0 %v822
    %894 = vmatprep.subr.mxu0 %v821
    %895 = vmatpush2.msra.mxu0 %v820
    %896 = vmatprep.subr.mxu0 %v819
    %897 = vmatpush2.msra.mxu0 %v818
    %898 = vmatprep.subr.mxu0 %v817
    %899 = vmatpush2.msra.mxu0 %v816
    %900 = vmatprep.subr.mxu0 %v815
    %901 = vmatpush2.msra.mxu0 %v814
    %902 = vmatprep.subr.mxu0 %v813
    %903 = vmatpush2.msra.mxu0 %v812
    %904 = vmatprep.subr.mxu0 %v811
    %905 = vmatpush2.msra.mxu0 %v810
    %906 = vmatprep.subr.mxu0 %v809
    %907 = vmatpush2.msra.mxu0 %v808
    %908 = vmatprep.subr.mxu0 %v807
    %909 = vmatpush2.msra.mxu0 %v806
    %910 = vmatprep.subr.mxu0 %v805
    %911 = vmatpush2.msra.mxu0 %v804
    %912 = vmatprep.mubr.f32.mxu0 %v40
    %913 = vmatmul.mubr.f32.gmra.mxu0 %v39
    %v914 = vpop.f32.mrf.mxu0
    %v915 = vadd.f32 0.0, %v914
    %v916 = vpop.f32.mrf.mxu0
    %v917 = vadd.f32 0.0, %v916
    %918 = vdwg.mxu0
    %919 = vmatprep.subr.mxu0 0.0
    %920 = vmatpush1.msra.mxu0 0.0
    %921 = vmatprep.subr.mxu0 0.0
    %922 = vmatpush1.msra.mxu0 0.0
    %923 = vmatprep.subr.mxu0 0.0
    %924 = vmatpush1.msra.mxu0 0.0
    %925 = vmatprep.subr.mxu0 0.0
    %926 = vmatpush1.msra.mxu0 0.0
    %927 = vmatprep.subr.mxu0 0.0
    %928 = vmatpush1.msra.mxu0 0.0
    %929 = vmatprep.subr.mxu0 0.0
    %930 = vmatpush1.msra.mxu0 0.0
    %931 = vmatprep.subr.mxu0 0.0
    %932 = vmatpush1.msra.mxu0 0.0
    %933 = vmatprep.subr.mxu0 0.0
    %934 = vmatpush1.msra.mxu0 0.0
    %935 = vmatprep.subr.mxu0 0.0
    %936 = vmatpush1.msra.mxu0 0.0
    %937 = vmatprep.subr.mxu0 0.0
    %938 = vmatpush1.msra.mxu0 0.0
    %939 = vmatprep.subr.mxu0 0.0
    %940 = vmatpush1.msra.mxu0 0.0
    %941 = vmatprep.subr.mxu0 0.0
    %942 = vmatpush1.msra.mxu0 0.0
    %943 = vmatprep.subr.mxu0 %v843
    %944 = vmatpush1.msra.mxu0 %v842
    %945 = vmatprep.subr.mxu0 %v841
    %946 = vmatpush1.msra.mxu0 %v840
    %947 = vmatprep.subr.mxu0 %v839
    %948 = vmatpush1.msra.mxu0 %v838
    %949 = vmatprep.subr.mxu0 %v837
    %950 = vmatpush1.msra.mxu0 %v836
    %951 = vmatprep.subr.mxu0 0.0
    %952 = vmatpush2.msra.mxu0 0.0
    %953 = vmatprep.subr.mxu0 0.0
    %954 = vmatpush2.msra.mxu0 0.0
    %955 = vmatprep.subr.mxu0 0.0
    %956 = vmatpush2.msra.mxu0 0.0
    %957 = vmatprep.subr.mxu0 0.0
    %958 = vmatpush2.msra.mxu0 0.0
    %959 = vmatprep.subr.mxu0 0.0
    %960 = vmatpush2.msra.mxu0 0.0
    %961 = vmatprep.subr.mxu0 0.0
    %962 = vmatpush2.msra.mxu0 0.0
    %963 = vmatprep.subr.mxu0 0.0
    %964 = vmatpush2.msra.mxu0 0.0
    %965 = vmatprep.subr.mxu0 0.0
    %966 = vmatpush2.msra.mxu0 0.0
    %967 = vmatprep.subr.mxu0 0.0
    %968 = vmatpush2.msra.mxu0 0.0
    %969 = vmatprep.subr.mxu0 0.0
    %970 = vmatpush2.msra.mxu0 0.0
    %971 = vmatprep.subr.mxu0 0.0
    %972 = vmatpush2.msra.mxu0 0.0
    %973 = vmatprep.subr.mxu0 0.0
    %974 = vmatpush2.msra.mxu0 0.0
    %975 = vmatprep.subr.mxu0 0.0
    %976 = vmatpush2.msra.mxu0 0.0
    %977 = vmatprep.subr.mxu0 0.0
    %978 = vmatpush2.msra.mxu0 0.0
    %979 = vmatprep.subr.mxu0 0.0
    %980 = vmatpush2.msra.mxu0 0.0
    %981 = vmatprep.subr.mxu0 0.0
    %982 = vmatpush2.msra.mxu0 0.0
    %983 = vmatprep.mubr.f32.mxu0 0.0
    %984 = vmatmul.mubr.f32.gmra.mxu0 %v846
    %v985 = vpop.f32.mrf.mxu0
    %v986 = vadd.f32 %v915, %v985
    %v987 = vpop.f32.mrf.mxu0
    %v988 = vadd.f32 %v917, %v987
    %989 = vdwg.mxu0
    %990 = vst [vmem:[#allocation3] sm:$0xff] %v986
    %991 = vst [vmem:[#allocation3 + $0x8] sm:$0xff] %v988
    %s992 = scalar_lea.vmem %s0, 8
    %v993 = vld [vmem:[%s992] sm:$0xff]
    %v994 = vld [vmem:[%s2] sm:$0xf]
    %996 = vset.pattern.permute.xlu0 0
    %997 = vperm.xlu0 %996, %v994
    %v998 = vpop.permute.xlu0 %997
    %v1000 = vunpack.c.l.s4 839922192
    %v1001 = vunpack.c.0.s8 %v1000
    %v1002 = vlaneseq
    %v1003 = vshrl.u32 %v1002, 7
    %v1004 = vsub.s32 %v1001, %v1003
    %v1005 = vrot.slane %v998, %v1004
    %v1007 = vmul.f32 %v993, %v1005
    %v1008 = vld [vmem:[%s4] sm:$0xf]
    %1010 = vset.pattern.permute.xlu0 0
    %1011 = vperm.xlu0 %1010, %v1008
    %v1012 = vpop.permute.xlu0 %1011
    %v1014 = vunpack.c.l.s4 839922192
    %v1015 = vunpack.c.0.s8 %v1014
    %v1016 = vlaneseq
    %v1017 = vshrl.u32 %v1016, 7
    %v1018 = vsub.s32 %v1015, %v1017
    %v1019 = vrot.slane %v1012, %v1018
    %v1021 = vadd.f32 %v1007, %v1019
    %v1022 = vmax.f32 %v1021, 0.0
    %v1023 = vld [vmem:[%s6] sm:$0xff]
    %v1024 = vld [vmem:[%s6 + $0x8] sm:$0xff]
    %v1025 = vld [vmem:[%s6 + $0x10] sm:$0xff]
    %v1026 = vld [vmem:[%s6 + $0x18] sm:$0xff]
    %s1027 = scalar_lea.vmem %s1, 8
    %v1028 = vld [vmem:[%s1027] sm:$0xff]
    %v1029 = vld [vmem:[%s3] sm:$0xf]
    %1031 = vset.pattern.permute.xlu0 0
    %1032 = vperm.xlu0 %1031, %v1029
    %v1033 = vpop.permute.xlu0 %1032
    %v1035 = vunpack.c.l.s4 839922192
    %v1036 = vunpack.c.0.s8 %v1035
    %v1037 = vlaneseq
    %v1038 = vshrl.u32 %v1037, 7
    %v1039 = vsub.s32 %v1036, %v1038
    %v1040 = vrot.slane %v1033, %v1039
    %v1042 = vmul.f32 %v1028, %v1040
    %v1043 = vld [vmem:[%s5] sm:$0xf]
    %1045 = vset.pattern.permute.xlu0 0
    %1046 = vperm.xlu0 %1045, %v1043
    %v1047 = vpop.permute.xlu0 %1046
    %v1049 = vunpack.c.l.s4 839922192
    %v1050 = vunpack.c.0.s8 %v1049
    %v1051 = vlaneseq
    %v1052 = vshrl.u32 %v1051, 7
    %v1053 = vsub.s32 %v1050, %v1052
    %v1054 = vrot.slane %v1047, %v1053
    %v1056 = vadd.f32 %v1042, %v1054
    %v1057 = vmax.f32 %v1056, 0.0
    %v1058 = vld [vmem:[%s7] sm:$0xff]
    %v1059 = vld [vmem:[%s7 + $0x8] sm:$0xff]
    %v1060 = vld [vmem:[%s7 + $0x10] sm:$0xff]
    %v1061 = vld [vmem:[%s7 + $0x18] sm:$0xff]
    %v1063 = vcombine.high %v1057, %v1057
    %v1065 = vsel %vm120, %v1058, 0
    %v1068 = vsel %vm120, %v1059, 0
    %v1071 = vsel %vm120, %v1060, 0
    %v1074 = vsel %vm120, %v1061, 0
    %v1076 = vsel %vm133, %v1057, 0
    %v1078 = vsel %vm133, %v1063, 0
    %1080 = vmatprep.subr.mxu0 0.0
    %1081 = vmatpush1.msra.mxu0 0.0
    %1082 = vmatprep.subr.mxu0 0.0
    %1083 = vmatpush1.msra.mxu0 0.0
    %1084 = vmatprep.subr.mxu0 0.0
    %1085 = vmatpush1.msra.mxu0 0.0
    %1086 = vmatprep.subr.mxu0 0.0
    %1087 = vmatpush1.msra.mxu0 0.0
    %1088 = vmatprep.subr.mxu0 0.0
    %1089 = vmatpush1.msra.mxu0 0.0
    %1090 = vmatprep.subr.mxu0 0.0
    %1091 = vmatpush1.msra.mxu0 0.0
    %1092 = vmatprep.subr.mxu0 0.0
    %1093 = vmatpush1.msra.mxu0 0.0
    %1094 = vmatprep.subr.mxu0 0.0
    %1095 = vmatpush1.msra.mxu0 0.0
    %1096 = vmatprep.subr.mxu0 0.0
    %1097 = vmatpush1.msra.mxu0 0.0
    %1098 = vmatprep.subr.mxu0 0.0
    %1099 = vmatpush1.msra.mxu0 0.0
    %1100 = vmatprep.subr.mxu0 0.0
    %1101 = vmatpush1.msra.mxu0 0.0
    %1102 = vmatprep.subr.mxu0 0.0
    %1103 = vmatpush1.msra.mxu0 0.0
    %1104 = vmatprep.subr.mxu0 0.0
    %1105 = vmatpush1.msra.mxu0 0.0
    %1106 = vmatprep.subr.mxu0 0.0
    %1107 = vmatpush1.msra.mxu0 0.0
    %1108 = vmatprep.subr.mxu0 0.0
    %1109 = vmatpush1.msra.mxu0 0.0
    %1110 = vmatprep.subr.mxu0 %v1078
    %1111 = vmatpush1.msra.mxu0 %v1076
    %1112 = vmatprep.subr.mxu0 0.0
    %1113 = vmatpush2.msra.mxu0 0.0
    %1114 = vmatprep.subr.mxu0 0.0
    %1115 = vmatpush2.msra.mxu0 0.0
    %1116 = vmatprep.subr.mxu0 0.0
    %1117 = vmatpush2.msra.mxu0 0.0
    %1118 = vmatprep.subr.mxu0 0.0
    %1119 = vmatpush2.msra.mxu0 0.0
    %1120 = vmatprep.subr.mxu0 0.0
    %1121 = vmatpush2.msra.mxu0 0.0
    %1122 = vmatprep.subr.mxu0 0.0
    %1123 = vmatpush2.msra.mxu0 0.0
    %1124 = vmatprep.subr.mxu0 0.0
    %1125 = vmatpush2.msra.mxu0 0.0
    %1126 = vmatprep.subr.mxu0 0.0
    %1127 = vmatpush2.msra.mxu0 0.0
    %1128 = vmatprep.subr.mxu0 0.0
    %1129 = vmatpush2.msra.mxu0 0.0
    %1130 = vmatprep.subr.mxu0 0.0
    %1131 = vmatpush2.msra.mxu0 0.0
    %1132 = vmatprep.subr.mxu0 0.0
    %1133 = vmatpush2.msra.mxu0 0.0
    %1134 = vmatprep.subr.mxu0 0.0
    %1135 = vmatpush2.msra.mxu0 0.0
    %1136 = vmatprep.subr.mxu0 0.0
    %1137 = vmatpush2.msra.mxu0 0.0
    %1138 = vmatprep.subr.mxu0 0.0
    %1139 = vmatpush2.msra.mxu0 0.0
    %1140 = vmatprep.subr.mxu0 0.0
    %1141 = vmatpush2.msra.mxu0 0.0
    %1142 = vmatprep.subr.mxu0 0.0
    %1143 = vmatpush2.msra.mxu0 0.0
    %1144 = vmatprep.mubr.f32.mxu0 0.0
    %1145 = vmatmul.mubr.f32.gmra.mxu0 %v1065
    %v1146 = vpop.f32.mrf.mxu0
    %v1147 = vadd.f32 0.0, %v1146
    %v1148 = vpop.f32.mrf.mxu0
    %v1149 = vadd.f32 0.0, %v1148
    %1150 = vmatprep.mubr.f32.mxu0 0.0
    %1151 = vmatmul.mubr.f32.gmra.mxu0 %v1068
    %v1152 = vpop.f32.mrf.mxu0
    %v1153 = vadd.f32 0.0, %v1152
    %v1154 = vpop.f32.mrf.mxu0
    %v1155 = vadd.f32 0.0, %v1154
    %1156 = vmatprep.mubr.f32.mxu0 0.0
    %1157 = vmatmul.mubr.f32.gmra.mxu0 %v1071
    %v1158 = vpop.f32.mrf.mxu0
    %v1159 = vadd.f32 0.0, %v1158
    %v1160 = vpop.f32.mrf.mxu0
    %v1161 = vadd.f32 0.0, %v1160
    %1162 = vmatprep.mubr.f32.mxu0 0.0
    %1163 = vmatmul.mubr.f32.gmra.mxu0 %v1074
    %v1164 = vpop.f32.mrf.mxu0
    %v1165 = vadd.f32 0.0, %v1164
    %v1166 = vpop.f32.mrf.mxu0
    %v1167 = vadd.f32 0.0, %v1166
    %1168 = vdwg.mxu0
    %v1170 = vcombine.high %v1022, %v1022
    %v1172 = vsel %vm120, %v1023, 0
    %v1175 = vsel %vm120, %v1024, 0
    %v1178 = vsel %vm120, %v1025, 0
    %v1181 = vsel %vm120, %v1026, 0
    %v1183 = vsel %vm133, %v1022, 0
    %v1185 = vsel %vm133, %v1170, 0
    %1187 = vmatprep.subr.mxu0 0.0
    %1188 = vmatpush1.msra.mxu0 0.0
    %1189 = vmatprep.subr.mxu0 0.0
    %1190 = vmatpush1.msra.mxu0 0.0
    %1191 = vmatprep.subr.mxu0 0.0
    %1192 = vmatpush1.msra.mxu0 0.0
    %1193 = vmatprep.subr.mxu0 0.0
    %1194 = vmatpush1.msra.mxu0 0.0
    %1195 = vmatprep.subr.mxu0 0.0
    %1196 = vmatpush1.msra.mxu0 0.0
    %1197 = vmatprep.subr.mxu0 0.0
    %1198 = vmatpush1.msra.mxu0 0.0
    %1199 = vmatprep.subr.mxu0 0.0
    %1200 = vmatpush1.msra.mxu0 0.0
    %1201 = vmatprep.subr.mxu0 0.0
    %1202 = vmatpush1.msra.mxu0 0.0
    %1203 = vmatprep.subr.mxu0 0.0
    %1204 = vmatpush1.msra.mxu0 0.0
    %1205 = vmatprep.subr.mxu0 0.0
    %1206 = vmatpush1.msra.mxu0 0.0
    %1207 = vmatprep.subr.mxu0 0.0
    %1208 = vmatpush1.msra.mxu0 0.0
    %1209 = vmatprep.subr.mxu0 0.0
    %1210 = vmatpush1.msra.mxu0 0.0
    %1211 = vmatprep.subr.mxu0 0.0
    %1212 = vmatpush1.msra.mxu0 0.0
    %1213 = vmatprep.subr.mxu0 0.0
    %1214 = vmatpush1.msra.mxu0 0.0
    %1215 = vmatprep.subr.mxu0 0.0
    %1216 = vmatpush1.msra.mxu0 0.0
    %1217 = vmatprep.subr.mxu0 %v1185
    %1218 = vmatpush1.msra.mxu0 %v1183
    %1219 = vmatprep.subr.mxu0 0.0
    %1220 = vmatpush2.msra.mxu0 0.0
    %1221 = vmatprep.subr.mxu0 0.0
    %1222 = vmatpush2.msra.mxu0 0.0
    %1223 = vmatprep.subr.mxu0 0.0
    %1224 = vmatpush2.msra.mxu0 0.0
    %1225 = vmatprep.subr.mxu0 0.0
    %1226 = vmatpush2.msra.mxu0 0.0
    %1227 = vmatprep.subr.mxu0 0.0
    %1228 = vmatpush2.msra.mxu0 0.0
    %1229 = vmatprep.subr.mxu0 0.0
    %1230 = vmatpush2.msra.mxu0 0.0
    %1231 = vmatprep.subr.mxu0 0.0
    %1232 = vmatpush2.msra.mxu0 0.0
    %1233 = vmatprep.subr.mxu0 0.0
    %1234 = vmatpush2.msra.mxu0 0.0
    %1235 = vmatprep.subr.mxu0 0.0
    %1236 = vmatpush2.msra.mxu0 0.0
    %1237 = vmatprep.subr.mxu0 0.0
    %1238 = vmatpush2.msra.mxu0 0.0
    %1239 = vmatprep.subr.mxu0 0.0
    %1240 = vmatpush2.msra.mxu0 0.0
    %1241 = vmatprep.subr.mxu0 0.0
    %1242 = vmatpush2.msra.mxu0 0.0
    %1243 = vmatprep.subr.mxu0 0.0
    %1244 = vmatpush2.msra.mxu0 0.0
    %1245 = vmatprep.subr.mxu0 0.0
    %1246 = vmatpush2.msra.mxu0 0.0
    %1247 = vmatprep.subr.mxu0 0.0
    %1248 = vmatpush2.msra.mxu0 0.0
    %1249 = vmatprep.subr.mxu0 0.0
    %1250 = vmatpush2.msra.mxu0 0.0
    %1251 = vmatprep.mubr.f32.mxu0 0.0
    %1252 = vmatmul.mubr.f32.gmra.mxu0 %v1172
    %v1253 = vpop.f32.mrf.mxu0
    %v1254 = vadd.f32 %v1147, %v1253
    %v1255 = vpop.f32.mrf.mxu0
    %v1256 = vadd.f32 %v1149, %v1255
    %1257 = vmatprep.mubr.f32.mxu0 0.0
    %1258 = vmatmul.mubr.f32.gmra.mxu0 %v1175
    %v1259 = vpop.f32.mrf.mxu0
    %v1260 = vadd.f32 %v1153, %v1259
    %v1261 = vpop.f32.mrf.mxu0
    %v1262 = vadd.f32 %v1155, %v1261
    %1263 = vmatprep.mubr.f32.mxu0 0.0
    %1264 = vmatmul.mubr.f32.gmra.mxu0 %v1178
    %v1265 = vpop.f32.mrf.mxu0
    %v1266 = vadd.f32 %v1159, %v1265
    %v1267 = vpop.f32.mrf.mxu0
    %v1268 = vadd.f32 %v1161, %v1267
    %1269 = vmatprep.mubr.f32.mxu0 0.0
    %1270 = vmatmul.mubr.f32.gmra.mxu0 %v1181
    %v1271 = vpop.f32.mrf.mxu0
    %v1272 = vadd.f32 %v1165, %v1271
    %v1273 = vpop.f32.mrf.mxu0
    %v1274 = vadd.f32 %v1167, %v1273
    %1275 = vdwg.mxu0
    %v1276 = vadd.f32 %v1254, %v337
    %v1277 = vadd.f32 %v1256, %v337
    %v1278 = vadd.f32 %v1260, %v342
    %v1279 = vadd.f32 %v1262, %v342
    %v1280 = vadd.f32 %v1266, %v347
    %v1281 = vadd.f32 %v1268, %v347
    %v1282 = vadd.f32 %v1272, %v352
    %v1283 = vadd.f32 %v1274, %v352
    %v1284 = vmax.f32 %v1276, 0.0
    %v1285 = vmax.f32 %v1277, 0.0
    %v1286 = vmax.f32 %v1278, 0.0
    %v1287 = vmax.f32 %v1279, 0.0
    %v1288 = vmax.f32 %v1280, 0.0
    %v1289 = vmax.f32 %v1281, 0.0
    %v1290 = vmax.f32 %v1282, 0.0
    %v1291 = vmax.f32 %v1283, 0.0
    %1292 = vrot.lane.b32.xlu0 %v1284, 17
    %v1293 = vpop.permute.xlu0 %1292
    %1294 = vrot.lane.b32.xlu0 %v1286, 17
    %v1295 = vpop.permute.xlu0 %1294
    %1296 = vrot.lane.b32.xlu0 %v1288, 17
    %v1297 = vpop.permute.xlu0 %1296
    %1298 = vrot.lane.b32.xlu0 %v1290, 17
    %v1299 = vpop.permute.xlu0 %1298
    %1300 = vrot.lane.b32.xlu0 %v1285, 17
    %v1301 = vpop.permute.xlu0 %1300
    %1302 = vrot.lane.b32.xlu0 %v1287, 17
    %v1303 = vpop.permute.xlu0 %1302
    %1304 = vrot.lane.b32.xlu0 %v1289, 17
    %v1305 = vpop.permute.xlu0 %1304
    %1306 = vrot.lane.b32.xlu0 %v1291, 17
    %v1307 = vpop.permute.xlu0 %1306
    %v1308 = vsel %vm388, %v1293, %v1301
    %v1309 = vsel %vm388, %v1295, %v1303
    %v1310 = vsel %vm388, %v1297, %v1305
    %v1311 = vsel %vm388, %v1299, %v1307
    %v1312 = vsel %vm388, %v1301, %v1293
    %v1313 = vsel %vm388, %v1303, %v1295
    %v1314 = vsel %vm388, %v1305, %v1297
    %v1315 = vsel %vm388, %v1307, %v1299
    %v1316 = vmul.f32 %v1312, %v400
    %v1317 = vmul.f32 %v1308, %v404
    %v1318 = vmul.f32 %v1313, %v400
    %v1319 = vmul.f32 %v1309, %v404
    %v1320 = vmul.f32 %v1314, %v400
    %v1321 = vmul.f32 %v1310, %v404
    %v1322 = vmul.f32 %v1315, %v400
    %v1323 = vmul.f32 %v1311, %v404
    %1324 = vst [vmem:[#allocation2] sm:$0xff] %v1316
    %1325 = vst [vmem:[#allocation2 + $0x8] sm:$0xff] %v1317
    %1326 = vst [vmem:[#allocation2 + $0x10] sm:$0xff] %v1318
    %1327 = vst [vmem:[#allocation2 + $0x18] sm:$0xff] %v1319
    %1328 = vst [vmem:[#allocation2 + $0x20] sm:$0xff] %v1320
    %1329 = vst [vmem:[#allocation2 + $0x28] sm:$0xff] %v1321
    %1330 = vst [vmem:[#allocation2 + $0x30] sm:$0xff] %v1322
    %1331 = vst [vmem:[#allocation2 + $0x38] sm:$0xff] %v1323
    %1332 = vrot.lane.b32.xlu0 %v1284, 16
    %v1333 = vpop.permute.xlu0 %1332
    %1334 = vrot.lane.b32.xlu0 %v1286, 16
    %v1335 = vpop.permute.xlu0 %1334
    %1336 = vrot.lane.b32.xlu0 %v1288, 16
    %v1337 = vpop.permute.xlu0 %1336
    %1338 = vrot.lane.b32.xlu0 %v1290, 16
    %v1339 = vpop.permute.xlu0 %1338
    %1340 = vrot.lane.b32.xlu0 %v1285, 16
    %v1341 = vpop.permute.xlu0 %1340
    %1342 = vrot.lane.b32.xlu0 %v1287, 16
    %v1343 = vpop.permute.xlu0 %1342
    %1344 = vrot.lane.b32.xlu0 %v1289, 16
    %v1345 = vpop.permute.xlu0 %1344
    %1346 = vrot.lane.b32.xlu0 %v1291, 16
    %v1347 = vpop.permute.xlu0 %1346
    %v1348 = vsel %vm437, %v1333, %v1341
    %v1349 = vsel %vm437, %v1335, %v1343
    %v1350 = vsel %vm437, %v1337, %v1345
    %v1351 = vsel %vm437, %v1339, %v1347
    %v1352 = vsel %vm437, %v1341, %v1333
    %v1353 = vsel %vm437, %v1343, %v1335
    %v1354 = vsel %vm437, %v1345, %v1337
    %v1355 = vsel %vm437, %v1347, %v1339
    %v1356 = vmul.f32 %v1352, %v449
    %v1357 = vmul.f32 %v1348, %v453
    %v1358 = vmul.f32 %v1353, %v449
    %v1359 = vmul.f32 %v1349, %v453
    %v1360 = vmul.f32 %v1354, %v449
    %v1361 = vmul.f32 %v1350, %v453
    %v1362 = vmul.f32 %v1355, %v449
    %v1363 = vmul.f32 %v1351, %v453
    %1364 = vst [vmem:[#allocation2 + $0x40] sm:$0xff] %v1356
    %1365 = vst [vmem:[#allocation2 + $0x48] sm:$0xff] %v1357
    %1366 = vst [vmem:[#allocation2 + $0x50] sm:$0xff] %v1358
    %1367 = vst [vmem:[#allocation2 + $0x58] sm:$0xff] %v1359
    %1368 = vst [vmem:[#allocation2 + $0x60] sm:$0xff] %v1360
    %1369 = vst [vmem:[#allocation2 + $0x68] sm:$0xff] %v1361
    %1370 = vst [vmem:[#allocation2 + $0x70] sm:$0xff] %v1362
    %1371 = vst [vmem:[#allocation2 + $0x78] sm:$0xff] %v1363
    %1372 = vrot.lane.b32.xlu0 %v1284, 15
    %v1373 = vpop.permute.xlu0 %1372
    %1374 = vrot.lane.b32.xlu0 %v1286, 15
    %v1375 = vpop.permute.xlu0 %1374
    %1376 = vrot.lane.b32.xlu0 %v1288, 15
    %v1377 = vpop.permute.xlu0 %1376
    %1378 = vrot.lane.b32.xlu0 %v1290, 15
    %v1379 = vpop.permute.xlu0 %1378
    %1380 = vrot.lane.b32.xlu0 %v1285, 15
    %v1381 = vpop.permute.xlu0 %1380
    %1382 = vrot.lane.b32.xlu0 %v1287, 15
    %v1383 = vpop.permute.xlu0 %1382
    %1384 = vrot.lane.b32.xlu0 %v1289, 15
    %v1385 = vpop.permute.xlu0 %1384
    %1386 = vrot.lane.b32.xlu0 %v1291, 15
    %v1387 = vpop.permute.xlu0 %1386
    %v1388 = vsel %vm486, %v1373, %v1381
    %v1389 = vsel %vm486, %v1375, %v1383
    %v1390 = vsel %vm486, %v1377, %v1385
    %v1391 = vsel %vm486, %v1379, %v1387
    %v1392 = vsel %vm486, %v1381, %v1373
    %v1393 = vsel %vm486, %v1383, %v1375
    %v1394 = vsel %vm486, %v1385, %v1377
    %v1395 = vsel %vm486, %v1387, %v1379
    %v1396 = vmul.f32 %v1392, %v498
    %v1397 = vmul.f32 %v1388, %v502
    %v1398 = vmul.f32 %v1393, %v498
    %v1399 = vmul.f32 %v1389, %v502
    %v1400 = vmul.f32 %v1394, %v498
    %v1401 = vmul.f32 %v1390, %v502
    %v1402 = vmul.f32 %v1395, %v498
    %v1403 = vmul.f32 %v1391, %v502
    %1404 = vst [vmem:[#allocation2 + $0x80] sm:$0xff] %v1396
    %1405 = vst [vmem:[#allocation2 + $0x88] sm:$0xff] %v1397
    %1406 = vst [vmem:[#allocation2 + $0x90] sm:$0xff] %v1398
    %1407 = vst [vmem:[#allocation2 + $0x98] sm:$0xff] %v1399
    %1408 = vst [vmem:[#allocation2 + $0xa0] sm:$0xff] %v1400
    %1409 = vst [vmem:[#allocation2 + $0xa8] sm:$0xff] %v1401
    %1410 = vst [vmem:[#allocation2 + $0xb0] sm:$0xff] %v1402
    %1411 = vst [vmem:[#allocation2 + $0xb8] sm:$0xff] %v1403
    %1412 = vrot.lane.b32.xlu0 %v1284, 1
    %v1413 = vpop.permute.xlu0 %1412
    %1414 = vrot.lane.b32.xlu0 %v1286, 1
    %v1415 = vpop.permute.xlu0 %1414
    %1416 = vrot.lane.b32.xlu0 %v1288, 1
    %v1417 = vpop.permute.xlu0 %1416
    %1418 = vrot.lane.b32.xlu0 %v1290, 1
    %v1419 = vpop.permute.xlu0 %1418
    %1420 = vrot.lane.b32.xlu0 %v1285, 1
    %v1421 = vpop.permute.xlu0 %1420
    %1422 = vrot.lane.b32.xlu0 %v1287, 1
    %v1423 = vpop.permute.xlu0 %1422
    %1424 = vrot.lane.b32.xlu0 %v1289, 1
    %v1425 = vpop.permute.xlu0 %1424
    %1426 = vrot.lane.b32.xlu0 %v1291, 1
    %v1427 = vpop.permute.xlu0 %1426
    %v1428 = vsel %vm535, %v1413, %v1421
    %v1429 = vsel %vm535, %v1415, %v1423
    %v1430 = vsel %vm535, %v1417, %v1425
    %v1431 = vsel %vm535, %v1419, %v1427
    %v1432 = vsel %vm535, %v1421, %v1413
    %v1433 = vsel %vm535, %v1423, %v1415
    %v1434 = vsel %vm535, %v1425, %v1417
    %v1435 = vsel %vm535, %v1427, %v1419
    %v1436 = vmul.f32 %v1432, %v547
    %v1437 = vmul.f32 %v1428, %v551
    %v1438 = vmul.f32 %v1433, %v547
    %v1439 = vmul.f32 %v1429, %v551
    %v1440 = vmul.f32 %v1434, %v547
    %v1441 = vmul.f32 %v1430, %v551
    %v1442 = vmul.f32 %v1435, %v547
    %v1443 = vmul.f32 %v1431, %v551
    %1444 = vst [vmem:[#allocation2 + $0xc0] sm:$0xff] %v1436
    %1445 = vst [vmem:[#allocation2 + $0xc8] sm:$0xff] %v1437
    %1446 = vst [vmem:[#allocation2 + $0xd0] sm:$0xff] %v1438
    %1447 = vst [vmem:[#allocation2 + $0xd8] sm:$0xff] %v1439
    %1448 = vst [vmem:[#allocation2 + $0xe0] sm:$0xff] %v1440
    %1449 = vst [vmem:[#allocation2 + $0xe8] sm:$0xff] %v1441
    %1450 = vst [vmem:[#allocation2 + $0xf0] sm:$0xff] %v1442
    %1451 = vst [vmem:[#allocation2 + $0xf8] sm:$0xff] %v1443
    %1452 = vst [vmem:[#allocation2 + $0x100] sm:$0xff] %v1284
    %1453 = vst [vmem:[#allocation2 + $0x108] sm:$0xff] %v1285
    %1454 = vst [vmem:[#allocation2 + $0x110] sm:$0xff] %v1286
    %1455 = vst [vmem:[#allocation2 + $0x118] sm:$0xff] %v1287
    %1456 = vst [vmem:[#allocation2 + $0x120] sm:$0xff] %v1288
    %1457 = vst [vmem:[#allocation2 + $0x128] sm:$0xff] %v1289
    %1458 = vst [vmem:[#allocation2 + $0x130] sm:$0xff] %v1290
    %1459 = vst [vmem:[#allocation2 + $0x138] sm:$0xff] %v1291
    %1460 = vrot.lane.b32.xlu0 %v1284, 127
    %v1461 = vpop.permute.xlu0 %1460
    %1462 = vrot.lane.b32.xlu0 %v1286, 127
    %v1463 = vpop.permute.xlu0 %1462
    %1464 = vrot.lane.b32.xlu0 %v1288, 127
    %v1465 = vpop.permute.xlu0 %1464
    %1466 = vrot.lane.b32.xlu0 %v1290, 127
    %v1467 = vpop.permute.xlu0 %1466
    %1468 = vrot.lane.b32.xlu0 %v1285, 127
    %v1469 = vpop.permute.xlu0 %1468
    %1470 = vrot.lane.b32.xlu0 %v1287, 127
    %v1471 = vpop.permute.xlu0 %1470
    %1472 = vrot.lane.b32.xlu0 %v1289, 127
    %v1473 = vpop.permute.xlu0 %1472
    %1474 = vrot.lane.b32.xlu0 %v1291, 127
    %v1475 = vpop.permute.xlu0 %1474
    %v1476 = vsel %vm592, %v1461, %v1469
    %v1477 = vsel %vm592, %v1463, %v1471
    %v1478 = vsel %vm592, %v1465, %v1473
    %v1479 = vsel %vm592, %v1467, %v1475
    %v1480 = vsel %vm592, %v1469, %v1461
    %v1481 = vsel %vm592, %v1471, %v1463
    %v1482 = vsel %vm592, %v1473, %v1465
    %v1483 = vsel %vm592, %v1475, %v1467
    %v1484 = vmul.f32 %v1476, %v604
    %v1485 = vmul.f32 %v1480, %v608
    %v1486 = vmul.f32 %v1477, %v604
    %v1487 = vmul.f32 %v1481, %v608
    %v1488 = vmul.f32 %v1478, %v604
    %v1489 = vmul.f32 %v1482, %v608
    %v1490 = vmul.f32 %v1479, %v604
    %v1491 = vmul.f32 %v1483, %v608
    %1492 = vst [vmem:[#allocation2 + $0x140] sm:$0xff] %v1484
    %1493 = vst [vmem:[#allocation2 + $0x148] sm:$0xff] %v1485
    %1494 = vst [vmem:[#allocation2 + $0x150] sm:$0xff] %v1486
    %1495 = vst [vmem:[#allocation2 + $0x158] sm:$0xff] %v1487
    %1496 = vst [vmem:[#allocation2 + $0x160] sm:$0xff] %v1488
    %1497 = vst [vmem:[#allocation2 + $0x168] sm:$0xff] %v1489
    %1498 = vst [vmem:[#allocation2 + $0x170] sm:$0xff] %v1490
    %1499 = vst [vmem:[#allocation2 + $0x178] sm:$0xff] %v1491
    %1500 = vrot.lane.b32.xlu0 %v1284, 113
    %v1501 = vpop.permute.xlu0 %1500
    %1502 = vrot.lane.b32.xlu0 %v1286, 113
    %v1503 = vpop.permute.xlu0 %1502
    %1504 = vrot.lane.b32.xlu0 %v1288, 113
    %v1505 = vpop.permute.xlu0 %1504
    %1506 = vrot.lane.b32.xlu0 %v1290, 113
    %v1507 = vpop.permute.xlu0 %1506
    %1508 = vrot.lane.b32.xlu0 %v1285, 113
    %v1509 = vpop.permute.xlu0 %1508
    %1510 = vrot.lane.b32.xlu0 %v1287, 113
    %v1511 = vpop.permute.xlu0 %1510
    %1512 = vrot.lane.b32.xlu0 %v1289, 113
    %v1513 = vpop.permute.xlu0 %1512
    %1514 = vrot.lane.b32.xlu0 %v1291, 113
    %v1515 = vpop.permute.xlu0 %1514
    %v1516 = vsel %vm641, %v1501, %v1509
    %v1517 = vsel %vm641, %v1503, %v1511
    %v1518 = vsel %vm641, %v1505, %v1513
    %v1519 = vsel %vm641, %v1507, %v1515
    %v1520 = vsel %vm641, %v1509, %v1501
    %v1521 = vsel %vm641, %v1511, %v1503
    %v1522 = vsel %vm641, %v1513, %v1505
    %v1523 = vsel %vm641, %v1515, %v1507
    %v1524 = vmul.f32 %v1516, %v653
    %v1525 = vmul.f32 %v1520, %v657
    %v1526 = vmul.f32 %v1517, %v653
    %v1527 = vmul.f32 %v1521, %v657
    %v1528 = vmul.f32 %v1518, %v653
    %v1529 = vmul.f32 %v1522, %v657
    %v1530 = vmul.f32 %v1519, %v653
    %v1531 = vmul.f32 %v1523, %v657
    %1532 = vst [vmem:[#allocation2 + $0x180] sm:$0xff] %v1524
    %1533 = vst [vmem:[#allocation2 + $0x188] sm:$0xff] %v1525
    %1534 = vst [vmem:[#allocation2 + $0x190] sm:$0xff] %v1526
    %1535 = vst [vmem:[#allocation2 + $0x198] sm:$0xff] %v1527
    %1536 = vst [vmem:[#allocation2 + $0x1a0] sm:$0xff] %v1528
    %1537 = vst [vmem:[#allocation2 + $0x1a8] sm:$0xff] %v1529
    %1538 = vst [vmem:[#allocation2 + $0x1b0] sm:$0xff] %v1530
    %1539 = vst [vmem:[#allocation2 + $0x1b8] sm:$0xff] %v1531
    %1540 = vrot.lane.b32.xlu0 %v1284, 112
    %v1541 = vpop.permute.xlu0 %1540
    %1542 = vrot.lane.b32.xlu0 %v1286, 112
    %v1543 = vpop.permute.xlu0 %1542
    %1544 = vrot.lane.b32.xlu0 %v1288, 112
    %v1545 = vpop.permute.xlu0 %1544
    %1546 = vrot.lane.b32.xlu0 %v1290, 112
    %v1547 = vpop.permute.xlu0 %1546
    %1548 = vrot.lane.b32.xlu0 %v1285, 112
    %v1549 = vpop.permute.xlu0 %1548
    %1550 = vrot.lane.b32.xlu0 %v1287, 112
    %v1551 = vpop.permute.xlu0 %1550
    %1552 = vrot.lane.b32.xlu0 %v1289, 112
    %v1553 = vpop.permute.xlu0 %1552
    %1554 = vrot.lane.b32.xlu0 %v1291, 112
    %v1555 = vpop.permute.xlu0 %1554
    %v1556 = vsel %vm690, %v1541, %v1549
    %v1557 = vsel %vm690, %v1543, %v1551
    %v1558 = vsel %vm690, %v1545, %v1553
    %v1559 = vsel %vm690, %v1547, %v1555
    %v1560 = vsel %vm690, %v1549, %v1541
    %v1561 = vsel %vm690, %v1551, %v1543
    %v1562 = vsel %vm690, %v1553, %v1545
    %v1563 = vsel %vm690, %v1555, %v1547
    %v1564 = vmul.f32 %v1556, %v702
    %v1565 = vmul.f32 %v1560, %v706
    %v1566 = vmul.f32 %v1557, %v702
    %v1567 = vmul.f32 %v1561, %v706
    %v1568 = vmul.f32 %v1558, %v702
    %v1569 = vmul.f32 %v1562, %v706
    %v1570 = vmul.f32 %v1559, %v702
    %v1571 = vmul.f32 %v1563, %v706
    %1572 = vst [vmem:[#allocation2 + $0x1c0] sm:$0xff] %v1564
    %1573 = vst [vmem:[#allocation2 + $0x1c8] sm:$0xff] %v1565
    %1574 = vst [vmem:[#allocation2 + $0x1d0] sm:$0xff] %v1566
    %1575 = vst [vmem:[#allocation2 + $0x1d8] sm:$0xff] %v1567
    %1576 = vst [vmem:[#allocation2 + $0x1e0] sm:$0xff] %v1568
    %1577 = vst [vmem:[#allocation2 + $0x1e8] sm:$0xff] %v1569
    %1578 = vst [vmem:[#allocation2 + $0x1f0] sm:$0xff] %v1570
    %1579 = vst [vmem:[#allocation2 + $0x1f8] sm:$0xff] %v1571
    %1580 = vrot.lane.b32.xlu0 %v1284, 111
    %v1581 = vpop.permute.xlu0 %1580
    %1582 = vrot.lane.b32.xlu0 %v1286, 111
    %v1583 = vpop.permute.xlu0 %1582
    %1584 = vrot.lane.b32.xlu0 %v1288, 111
    %v1585 = vpop.permute.xlu0 %1584
    %1586 = vrot.lane.b32.xlu0 %v1290, 111
    %v1587 = vpop.permute.xlu0 %1586
    %1588 = vrot.lane.b32.xlu0 %v1285, 111
    %v1589 = vpop.permute.xlu0 %1588
    %1590 = vrot.lane.b32.xlu0 %v1287, 111
    %v1591 = vpop.permute.xlu0 %1590
    %1592 = vrot.lane.b32.xlu0 %v1289, 111
    %v1593 = vpop.permute.xlu0 %1592
    %1594 = vrot.lane.b32.xlu0 %v1291, 111
    %v1595 = vpop.permute.xlu0 %1594
    %v1596 = vsel %vm739, %v1581, %v1589
    %v1597 = vsel %vm739, %v1583, %v1591
    %v1598 = vsel %vm739, %v1585, %v1593
    %v1599 = vsel %vm739, %v1587, %v1595
    %v1600 = vsel %vm739, %v1589, %v1581
    %v1601 = vsel %vm739, %v1591, %v1583
    %v1602 = vsel %vm739, %v1593, %v1585
    %v1603 = vsel %vm739, %v1595, %v1587
    %v1604 = vmul.f32 %v1596, %v751
    %v1605 = vmul.f32 %v1600, %v755
    %v1606 = vmul.f32 %v1597, %v751
    %v1607 = vmul.f32 %v1601, %v755
    %v1608 = vmul.f32 %v1598, %v751
    %v1609 = vmul.f32 %v1602, %v755
    %v1610 = vmul.f32 %v1599, %v751
    %v1611 = vmul.f32 %v1603, %v755
    %1612 = vst [vmem:[#allocation2 + $0x200] sm:$0xff] %v1604
    %1613 = vst [vmem:[#allocation2 + $0x208] sm:$0xff] %v1605
    %1614 = vst [vmem:[#allocation2 + $0x210] sm:$0xff] %v1606
    %1615 = vst [vmem:[#allocation2 + $0x218] sm:$0xff] %v1607
    %1616 = vst [vmem:[#allocation2 + $0x220] sm:$0xff] %v1608
    %1617 = vst [vmem:[#allocation2 + $0x228] sm:$0xff] %v1609
    %1618 = vst [vmem:[#allocation2 + $0x230] sm:$0xff] %v1610
    %1619 = vst [vmem:[#allocation2 + $0x238] sm:$0xff] %v1611
    %v1620 = vld [vmem:[#allocation2] sm:$0xff]
    %v1621 = vld [vmem:[#allocation2 + $0x8] sm:$0xff]
    %v1622 = vld [vmem:[#allocation2 + $0x10] sm:$0xff]
    %v1623 = vld [vmem:[#allocation2 + $0x18] sm:$0xff]
    %v1624 = vld [vmem:[#allocation2 + $0x20] sm:$0xff]
    %v1625 = vld [vmem:[#allocation2 + $0x28] sm:$0xff]
    %v1626 = vld [vmem:[#allocation2 + $0x30] sm:$0xff]
    %v1627 = vld [vmem:[#allocation2 + $0x38] sm:$0xff]
    %v1628 = vld [vmem:[#allocation2 + $0x40] sm:$0xff]
    %v1629 = vld [vmem:[#allocation2 + $0x48] sm:$0xff]
    %v1630 = vld [vmem:[#allocation2 + $0x50] sm:$0xff]
    %v1631 = vld [vmem:[#allocation2 + $0x58] sm:$0xff]
    %v1632 = vld [vmem:[#allocation2 + $0x60] sm:$0xff]
    %v1633 = vld [vmem:[#allocation2 + $0x68] sm:$0xff]
    %v1634 = vld [vmem:[#allocation2 + $0x70] sm:$0xff]
    %v1635 = vld [vmem:[#allocation2 + $0x78] sm:$0xff]
    %v1636 = vld [vmem:[#allocation2 + $0x80] sm:$0xff]
    %v1637 = vld [vmem:[#allocation2 + $0x88] sm:$0xff]
    %v1638 = vld [vmem:[#allocation2 + $0x90] sm:$0xff]
    %v1639 = vld [vmem:[#allocation2 + $0x98] sm:$0xff]
    %v1640 = vld [vmem:[#allocation2 + $0xa0] sm:$0xff]
    %v1641 = vld [vmem:[#allocation2 + $0xa8] sm:$0xff]
    %v1642 = vld [vmem:[#allocation2 + $0xb0] sm:$0xff]
    %v1643 = vld [vmem:[#allocation2 + $0xb8] sm:$0xff]
    %v1644 = vld [vmem:[#allocation2 + $0xc0] sm:$0xff]
    %v1645 = vld [vmem:[#allocation2 + $0xc8] sm:$0xff]
    %v1646 = vld [vmem:[#allocation2 + $0xd0] sm:$0xff]
    %v1647 = vld [vmem:[#allocation2 + $0xd8] sm:$0xff]
    %v1648 = vld [vmem:[#allocation2 + $0xe0] sm:$0xff]
    %v1649 = vld [vmem:[#allocation2 + $0xe8] sm:$0xff]
    %v1650 = vld [vmem:[#allocation2 + $0xf0] sm:$0xff]
    %v1651 = vld [vmem:[#allocation2 + $0xf8] sm:$0xff]
    %v1652 = vld [vmem:[#allocation2 + $0x100] sm:$0xff]
    %v1653 = vld [vmem:[#allocation2 + $0x108] sm:$0xff]
    %v1654 = vld [vmem:[#allocation2 + $0x110] sm:$0xff]
    %v1655 = vld [vmem:[#allocation2 + $0x118] sm:$0xff]
    %v1656 = vld [vmem:[#allocation2 + $0x120] sm:$0xff]
    %v1657 = vld [vmem:[#allocation2 + $0x128] sm:$0xff]
    %v1658 = vld [vmem:[#allocation2 + $0x130] sm:$0xff]
    %v1659 = vld [vmem:[#allocation2 + $0x138] sm:$0xff]
    %v1660 = vld [vmem:[#allocation2 + $0x140] sm:$0xff]
    %v1661 = vld [vmem:[#allocation2 + $0x148] sm:$0xff]
    %v1662 = vld [vmem:[#allocation2 + $0x150] sm:$0xff]
    %v1663 = vld [vmem:[#allocation2 + $0x158] sm:$0xff]
    %v1664 = vld [vmem:[#allocation2 + $0x160] sm:$0xff]
    %v1665 = vld [vmem:[#allocation2 + $0x168] sm:$0xff]
    %v1666 = vld [vmem:[#allocation2 + $0x170] sm:$0xff]
    %v1667 = vld [vmem:[#allocation2 + $0x178] sm:$0xff]
    %v1668 = vld [vmem:[#allocation2 + $0x180] sm:$0xff]
    %v1669 = vld [vmem:[#allocation2 + $0x188] sm:$0xff]
    %v1670 = vld [vmem:[#allocation2 + $0x190] sm:$0xff]
    %v1671 = vld [vmem:[#allocation2 + $0x198] sm:$0xff]
    %v1672 = vld [vmem:[#allocation2 + $0x1a0] sm:$0xff]
    %v1673 = vld [vmem:[#allocation2 + $0x1a8] sm:$0xff]
    %v1674 = vld [vmem:[#allocation2 + $0x1b0] sm:$0xff]
    %v1675 = vld [vmem:[#allocation2 + $0x1b8] sm:$0xff]
    %v1676 = vld [vmem:[#allocation2 + $0x1c0] sm:$0xff]
    %v1677 = vld [vmem:[#allocation2 + $0x1c8] sm:$0xff]
    %v1678 = vld [vmem:[#allocation2 + $0x1d0] sm:$0xff]
    %v1679 = vld [vmem:[#allocation2 + $0x1d8] sm:$0xff]
    %v1680 = vld [vmem:[#allocation2 + $0x1e0] sm:$0xff]
    %v1681 = vld [vmem:[#allocation2 + $0x1e8] sm:$0xff]
    %v1682 = vld [vmem:[#allocation2 + $0x1f0] sm:$0xff]
    %v1683 = vld [vmem:[#allocation2 + $0x1f8] sm:$0xff]
    %v1684 = vld [vmem:[#allocation2 + $0x200] sm:$0xff]
    %v1685 = vld [vmem:[#allocation2 + $0x208] sm:$0xff]
    %v1686 = vld [vmem:[#allocation2 + $0x210] sm:$0xff]
    %v1687 = vld [vmem:[#allocation2 + $0x218] sm:$0xff]
    %v1688 = vld [vmem:[#allocation2 + $0x220] sm:$0xff]
    %v1689 = vld [vmem:[#allocation2 + $0x228] sm:$0xff]
    %v1690 = vld [vmem:[#allocation2 + $0x230] sm:$0xff]
    %v1691 = vld [vmem:[#allocation2 + $0x238] sm:$0xff]
    %1692 = vmatprep.subr.mxu0 %v1651
    %1693 = vmatpush1.msra.mxu0 %v1650
    %1694 = vmatprep.subr.mxu0 %v1649
    %1695 = vmatpush1.msra.mxu0 %v1648
    %1696 = vmatprep.subr.mxu0 %v1647
    %1697 = vmatpush1.msra.mxu0 %v1646
    %1698 = vmatprep.subr.mxu0 %v1645
    %1699 = vmatpush1.msra.mxu0 %v1644
    %1700 = vmatprep.subr.mxu0 %v1643
    %1701 = vmatpush1.msra.mxu0 %v1642
    %1702 = vmatprep.subr.mxu0 %v1641
    %1703 = vmatpush1.msra.mxu0 %v1640
    %1704 = vmatprep.subr.mxu0 %v1639
    %1705 = vmatpush1.msra.mxu0 %v1638
    %1706 = vmatprep.subr.mxu0 %v1637
    %1707 = vmatpush1.msra.mxu0 %v1636
    %1708 = vmatprep.subr.mxu0 %v1635
    %1709 = vmatpush1.msra.mxu0 %v1634
    %1710 = vmatprep.subr.mxu0 %v1633
    %1711 = vmatpush1.msra.mxu0 %v1632
    %1712 = vmatprep.subr.mxu0 %v1631
    %1713 = vmatpush1.msra.mxu0 %v1630
    %1714 = vmatprep.subr.mxu0 %v1629
    %1715 = vmatpush1.msra.mxu0 %v1628
    %1716 = vmatprep.subr.mxu0 %v1627
    %1717 = vmatpush1.msra.mxu0 %v1626
    %1718 = vmatprep.subr.mxu0 %v1625
    %1719 = vmatpush1.msra.mxu0 %v1624
    %1720 = vmatprep.subr.mxu0 %v1623
    %1721 = vmatpush1.msra.mxu0 %v1622
    %1722 = vmatprep.subr.mxu0 %v1621
    %1723 = vmatpush1.msra.mxu0 %v1620
    %1724 = vmatprep.subr.mxu0 %v1683
    %1725 = vmatpush2.msra.mxu0 %v1682
    %1726 = vmatprep.subr.mxu0 %v1681
    %1727 = vmatpush2.msra.mxu0 %v1680
    %1728 = vmatprep.subr.mxu0 %v1679
    %1729 = vmatpush2.msra.mxu0 %v1678
    %1730 = vmatprep.subr.mxu0 %v1677
    %1731 = vmatpush2.msra.mxu0 %v1676
    %1732 = vmatprep.subr.mxu0 %v1675
    %1733 = vmatpush2.msra.mxu0 %v1674
    %1734 = vmatprep.subr.mxu0 %v1673
    %1735 = vmatpush2.msra.mxu0 %v1672
    %1736 = vmatprep.subr.mxu0 %v1671
    %1737 = vmatpush2.msra.mxu0 %v1670
    %1738 = vmatprep.subr.mxu0 %v1669
    %1739 = vmatpush2.msra.mxu0 %v1668
    %1740 = vmatprep.subr.mxu0 %v1667
    %1741 = vmatpush2.msra.mxu0 %v1666
    %1742 = vmatprep.subr.mxu0 %v1665
    %1743 = vmatpush2.msra.mxu0 %v1664
    %1744 = vmatprep.subr.mxu0 %v1663
    %1745 = vmatpush2.msra.mxu0 %v1662
    %1746 = vmatprep.subr.mxu0 %v1661
    %1747 = vmatpush2.msra.mxu0 %v1660
    %1748 = vmatprep.subr.mxu0 %v1659
    %1749 = vmatpush2.msra.mxu0 %v1658
    %1750 = vmatprep.subr.mxu0 %v1657
    %1751 = vmatpush2.msra.mxu0 %v1656
    %1752 = vmatprep.subr.mxu0 %v1655
    %1753 = vmatpush2.msra.mxu0 %v1654
    %1754 = vmatprep.subr.mxu0 %v1653
    %1755 = vmatpush2.msra.mxu0 %v1652
    %1756 = vmatprep.mubr.f32.mxu0 %v40
    %1757 = vmatmul.mubr.f32.gmra.mxu0 %v39
    %v1758 = vpop.f32.mrf.mxu0
    %v1759 = vadd.f32 0.0, %v1758
    %v1760 = vpop.f32.mrf.mxu0
    %v1761 = vadd.f32 0.0, %v1760
    %1762 = vdwg.mxu0
    %1763 = vmatprep.subr.mxu0 0.0
    %1764 = vmatpush1.msra.mxu0 0.0
    %1765 = vmatprep.subr.mxu0 0.0
    %1766 = vmatpush1.msra.mxu0 0.0
    %1767 = vmatprep.subr.mxu0 0.0
    %1768 = vmatpush1.msra.mxu0 0.0
    %1769 = vmatprep.subr.mxu0 0.0
    %1770 = vmatpush1.msra.mxu0 0.0
    %1771 = vmatprep.subr.mxu0 0.0
    %1772 = vmatpush1.msra.mxu0 0.0
    %1773 = vmatprep.subr.mxu0 0.0
    %1774 = vmatpush1.msra.mxu0 0.0
    %1775 = vmatprep.subr.mxu0 0.0
    %1776 = vmatpush1.msra.mxu0 0.0
    %1777 = vmatprep.subr.mxu0 0.0
    %1778 = vmatpush1.msra.mxu0 0.0
    %1779 = vmatprep.subr.mxu0 0.0
    %1780 = vmatpush1.msra.mxu0 0.0
    %1781 = vmatprep.subr.mxu0 0.0
    %1782 = vmatpush1.msra.mxu0 0.0
    %1783 = vmatprep.subr.mxu0 0.0
    %1784 = vmatpush1.msra.mxu0 0.0
    %1785 = vmatprep.subr.mxu0 0.0
    %1786 = vmatpush1.msra.mxu0 0.0
    %1787 = vmatprep.subr.mxu0 %v1691
    %1788 = vmatpush1.msra.mxu0 %v1690
    %1789 = vmatprep.subr.mxu0 %v1689
    %1790 = vmatpush1.msra.mxu0 %v1688
    %1791 = vmatprep.subr.mxu0 %v1687
    %1792 = vmatpush1.msra.mxu0 %v1686
    %1793 = vmatprep.subr.mxu0 %v1685
    %1794 = vmatpush1.msra.mxu0 %v1684
    %1795 = vmatprep.subr.mxu0 0.0
    %1796 = vmatpush2.msra.mxu0 0.0
    %1797 = vmatprep.subr.mxu0 0.0
    %1798 = vmatpush2.msra.mxu0 0.0
    %1799 = vmatprep.subr.mxu0 0.0
    %1800 = vmatpush2.msra.mxu0 0.0
    %1801 = vmatprep.subr.mxu0 0.0
    %1802 = vmatpush2.msra.mxu0 0.0
    %1803 = vmatprep.subr.mxu0 0.0
    %1804 = vmatpush2.msra.mxu0 0.0
    %1805 = vmatprep.subr.mxu0 0.0
    %1806 = vmatpush2.msra.mxu0 0.0
    %1807 = vmatprep.subr.mxu0 0.0
    %1808 = vmatpush2.msra.mxu0 0.0
    %1809 = vmatprep.subr.mxu0 0.0
    %1810 = vmatpush2.msra.mxu0 0.0
    %1811 = vmatprep.subr.mxu0 0.0
    %1812 = vmatpush2.msra.mxu0 0.0
    %1813 = vmatprep.subr.mxu0 0.0
    %1814 = vmatpush2.msra.mxu0 0.0
    %1815 = vmatprep.subr.mxu0 0.0
    %1816 = vmatpush2.msra.mxu0 0.0
    %1817 = vmatprep.subr.mxu0 0.0
    %1818 = vmatpush2.msra.mxu0 0.0
    %1819 = vmatprep.subr.mxu0 0.0
    %1820 = vmatpush2.msra.mxu0 0.0
    %1821 = vmatprep.subr.mxu0 0.0
    %1822 = vmatpush2.msra.mxu0 0.0
    %1823 = vmatprep.subr.mxu0 0.0
    %1824 = vmatpush2.msra.mxu0 0.0
    %1825 = vmatprep.subr.mxu0 0.0
    %1826 = vmatpush2.msra.mxu0 0.0
    %1827 = vmatprep.mubr.f32.mxu0 0.0
    %1828 = vmatmul.mubr.f32.gmra.mxu0 %v846
    %v1829 = vpop.f32.mrf.mxu0
    %v1830 = vadd.f32 %v1759, %v1829
    %v1831 = vpop.f32.mrf.mxu0
    %v1832 = vadd.f32 %v1761, %v1831
    %1833 = vdwg.mxu0
    %s1834 = scalar_lea.vmem [#allocation3], 16
    %1835 = vst [vmem:[%s1834] sm:$0xff] %v1830
    %1836 = vst [vmem:[%s1834 + $0x8] sm:$0xff] %v1832
    // Predicated region
    $region46: #{tpu_custom_call.1} parent=1 // pred_check
      _
    $region47: #{tpu_custom_call.1} parent=1 // pred_check_branch
      %1838 = sbr.rel (0) target = $region49
    $region48: #{tpu_custom_call.1} parent=1 // pred_region
      %s1840 = ssub.s32 512, 512
      %1841 = vsyncadd [#allocation4], %s1840
      %s1842 = sshll.u32 [#allocation3], 4
      %s1843 = int_to_ptr.vmem [resolvable:$true] %s1842
      %1848 = dma.vmem_to_hbm [thread:$0]  %s1843, 512, %s11, [#allocation4], 256, 256, 16
    $region49: #{tpu_custom_call.1} parent=1 // pred_fallthru
      _
    // Predicated region
    $region50: #{tpu_custom_call.1} parent=1 // pred_check
      _
    $region51: #{tpu_custom_call.1} parent=1 // pred_check_branch
      %1850 = sbr.rel (0) target = $region53
    $region52: #{tpu_custom_call.1} parent=1 // pred_region
      %1851 = dma.done [#allocation4], 512
    $region53: #{tpu_custom_call.1} parent=1 // pred_fallthru
      _
    %1852 = vsyncpa [#allocation4], 1

</llo_original>
